<compile_context>
chip_gen: v7x
topology: tpu7x:2x2x1
jax: 0.10.0
libtpu: 0.0.40
codegen_flags: <defaults>
</compile_context>

<pallas_src>
import functools

import jax
import jax.numpy as jnp
from jax import lax
from jax.experimental import pallas as pl
from jax.experimental.pallas import tpu as pltpu


def _preact_block_kernel(
    x_ref,                       # (1, H, W, Cin)            f32
    s1_ref, b1_ref,              # (1, 1, Cin)               f32  folded bn1
    s2_ref, b2_ref,              # (1, Cout)                 f32  folded bn2
    w1c_ref,                     # (9*Cin, Cout [+ Cout])    bf16 conv1 (+ folded 1x1 shortcut)
    w2f_ref,                     # (9*Cout, Cout)            bf16 conv2
    wf1_ref, bf1_ref,            # (Cout, Cmid), (1, Cmid)   f32  SE fc1
    wf2_ref, bf2_ref,            # (Cmid, Cout), (1, Cout)   f32  SE fc2
    out_ref,                     # (1, H*W, Cout)            f32
    pad1_ref,                    # (H+2, W+2, Cin)           f32 scratch
    pad2_ref,                    # (H+2, W+2, Cout)          f32 scratch
    im1_ref,                     # (H, W, 9*Cin)             f32 scratch (im2col, conv1)
    im2_ref,                     # (H, W, 9*Cout)            f32 scratch (im2col, conv2)
    *, has_shortcut: bool,
):
    _, H, W, Cin = x_ref.shape
    Cout = out_ref.shape[-1]
    f32, bf16 = jnp.float32, jnp.bfloat16

    x = x_ref[0]                                               # (H, W, Cin)

    # ---- bn1 (folded, eval-mode) + relu -----------------------------------
    a = jnp.maximum(x * s1_ref[...] + b1_ref[...], 0.0)

    # ---- conv1 (+ folded 1x1 shortcut): im2col + one K=9*Cin MXU matmul ----
    # zero only the 1-pixel halo; the interior is fully overwritten below.
    pad1_ref[0:1, :, :] = jnp.zeros((1, W + 2, Cin), f32)
    pad1_ref[H + 1:H + 2, :, :] = jnp.zeros((1, W + 2, Cin), f32)
    pad1_ref[1:H + 1, 0:1, :] = jnp.zeros((H, 1, Cin), f32)
    pad1_ref[1:H + 1, W + 1:W + 2, :] = jnp.zeros((H, 1, Cin), f32)
    pad1_ref[1:H + 1, 1:W + 1, :] = a

    for ky in range(3):
        for kx in range(3):
            t = ky * 3 + kx
            im1_ref[:, :, t * Cin:(t + 1) * Cin] = pad1_ref[ky:ky + H, kx:kx + W, :]

    im1 = im1_ref[...].reshape(H * W, 9 * Cin).astype(bf16)
    y = jnp.dot(im1, w1c_ref[...], preferred_element_type=f32)  # (H*W, Cout [*2])
    h1 = y[:, :Cout]

    # ---- bn2 (folded) + relu ----------------------------------------------
    h1 = jnp.maximum(h1 * s2_ref[...] + b2_ref[...], 0.0)       # (H*W, Cout)

    # ---- conv2: im2col + one K=9*Cout MXU matmul ---------------------------
    pad2_ref[0:1, :, :] = jnp.zeros((1, W + 2, Cout), f32)
    pad2_ref[H + 1:H + 2, :, :] = jnp.zeros((1, W + 2, Cout), f32)
    pad2_ref[1:H + 1, 0:1, :] = jnp.zeros((H, 1, Cout), f32)
    pad2_ref[1:H + 1, W + 1:W + 2, :] = jnp.zeros((H, 1, Cout), f32)
    pad2_ref[1:H + 1, 1:W + 1, :] = h1.reshape(H, W, Cout)

    for ky in range(3):
        for kx in range(3):
            t = ky * 3 + kx
            im2_ref[:, :, t * Cout:(t + 1) * Cout] = pad2_ref[ky:ky + H, kx:kx + W, :]

    im2 = im2_ref[...].reshape(H * W, 9 * Cout).astype(bf16)
    o = jnp.dot(im2, w2f_ref[...], preferred_element_type=f32)  # (H*W, Cout)

    # ---- squeeze-excite: global avg pool -> fc1 -> relu -> fc2 -> sigmoid --
    pooled = jnp.mean(o, axis=0, keepdims=True)                 # (1, Cout)
    se = jnp.maximum(
        jnp.dot(pooled, wf1_ref[...], preferred_element_type=f32) + bf1_ref[...], 0.0)
    se = jax.nn.sigmoid(
        jnp.dot(se, wf2_ref[...], preferred_element_type=f32) + bf2_ref[...])

    gated = o * se                                              # (H*W, Cout)

    if has_shortcut:
        res = gated + y[:, Cout:2 * Cout]                       # folded shortcut columns
    else:
        res = gated + x.reshape(H * W, Cin)                     # identity shortcut (Cin == Cout)
    out_ref[0] = res.astype(out_ref.dtype)


def preact_block_forward(x_nhwc, params, *, stride=1):
    """PreActBlock forward as a single pallas_call. x_nhwc: [N,H,W,Cin] -> [N,H,W,Cout]."""
    # TODO(synk): stride>1 (strided conv1 + strided 1x1 shortcut) not implemented.
    # TODO(synk): very large H*W per image would need an H-tiled grid with halo DMA and a
    #             two-pass SE reduction; per-image tiles are fine at ResNet block sizes.
    assert stride == 1, "only stride=1 supported in this kernel"
    N, H, W, Cin = x_nhwc.shape
    w1 = params["w1"]                               # (3, 3, Cin, Cout)  HWIO
    Cout = w1.shape[-1]
    Cmid = params["wf1"].shape[-1]
    has_shortcut = (stride != 1) or (Cin != Cout)
    f32, bf16 = jnp.float32, jnp.bfloat16

    eps = 1e-5
    s1 = params["g1"] / jnp.sqrt(params["v1"] + eps)
    b1 = params["be1"] - params["m1"] * s1
    s2 = params["g2"] / jnp.sqrt(params["v2"] + eps)
    b2 = params["be2"] - params["m2"] * s2

    # conv1 taps flattened to (9*Cin, Cout); fold the 1x1 shortcut in as Cout extra
    # output columns that only see the centre tap (ky = kx = 1).
    w1_flat = w1.reshape(9 * Cin, Cout)
    if has_shortcut:
        wsc_blk = jnp.zeros((9 * Cin, Cout), f32).at[4 * Cin:5 * Cin, :].set(params["wsc"])
        w1c = jnp.concatenate([w1_flat, wsc_blk], axis=1)       # (9*Cin, 2*Cout)
    else:
        w1c = w1_flat
    w1c = w1c.astype(bf16)
    w2f = params["w2"].reshape(9 * Cout, Cout).astype(bf16)

    args = [
        x_nhwc.astype(f32),
        s1.reshape(1, 1, Cin).astype(f32), b1.reshape(1, 1, Cin).astype(f32),
        s2.reshape(1, Cout).astype(f32), b2.reshape(1, Cout).astype(f32),
        w1c, w2f,
        params["wf1"].astype(f32), params["bf1"].reshape(1, Cmid).astype(f32),
        params["wf2"].astype(f32), params["bf2"].reshape(1, Cout).astype(f32),
    ]

    def full_spec(a):
        nd = a.ndim
        return pl.BlockSpec(a.shape, lambda n, _nd=nd: (0,) * _nd)

    in_specs = [pl.BlockSpec((1, H, W, Cin), lambda n: (n, 0, 0, 0))]
    in_specs += [full_spec(a) for a in args[1:]]

    kernel = functools.partial(_preact_block_kernel, has_shortcut=has_shortcut)

    out = pl.pallas_call(
        kernel,
        out_shape=jax.ShapeDtypeStruct((N, H * W, Cout), jnp.float32),
        grid=(N,),
        in_specs=in_specs,
        out_specs=pl.BlockSpec((1, H * W, Cout), lambda n: (n, 0, 0)),
        scratch_shapes=[
            pltpu.VMEM((H + 2, W + 2, Cin), jnp.float32),
            pltpu.VMEM((H + 2, W + 2, Cout), jnp.float32),
            pltpu.VMEM((H, W, 9 * Cin), jnp.float32),
            pltpu.VMEM((H, W, 9 * Cout), jnp.float32),
        ],
        compiler_params=pltpu.CompilerParams(
            dimension_semantics=("parallel",),
            vmem_limit_bytes=32 * 1024 * 1024,
        ),
    )(*args)

    return out.reshape(N, H, W, Cout)


def preact_block_reference(x_nhwc, params):
    """Pure-JAX NHWC reference mirroring the PyTorch forward (eval-mode BN, f32)."""
    eps = 1e-5
    dn = ("NHWC", "HWIO", "NHWC")
    HIGH = lax.Precision.HIGHEST
    Cin = x_nhwc.shape[-1]
    Cout = params["w1"].shape[-1]

    s1 = params["g1"] / jnp.sqrt(params["v1"] + eps)
    b1 = params["be1"] - params["m1"] * s1
    s2 = params["g2"] / jnp.sqrt(params["v2"] + eps)
    b2 = params["be2"] - params["m2"] * s2

    a = jnp.maximum(x_nhwc * s1 + b1, 0.0)
    sc = lax.conv_general_dilated(
        a, params["wsc"].reshape(1, 1, Cin, Cout), (1, 1), "VALID",
        dimension_numbers=dn, precision=HIGH) if Cin != Cout else x_nhwc
    h = lax.conv_general_dilated(a, params["w1"], (1, 1), "SAME",
                                 dimension_numbers=dn, precision=HIGH)
    h = jnp.maximum(h * s2 + b2, 0.0)
    o = lax.conv_general_dilated(h, params["w2"], (1, 1), "SAME",
                                 dimension_numbers=dn, precision=HIGH)
    w = jnp.mean(o, axis=(1, 2))                                # avg_pool2d(out, H)
    w = jnp.maximum(jnp.dot(w, params["wf1"], precision=HIGH) + params["bf1"], 0.0)
    w = jax.nn.sigmoid(jnp.dot(w, params["wf2"], precision=HIGH) + params["bf2"])
    return o * w[:, None, None, :] + sc


def make_params(key, in_planes, planes):
    ks = jax.random.split(key, 10)
    cmid = planes // 16
    return {
        # bn1 / bn2 (gamma, beta, running mean, running var)
        "g1": 1.0 + 0.1 * jax.random.normal(ks[0], (in_planes,), jnp.float32),
        "be1": 0.1 * jax.random.normal(ks[1], (in_planes,), jnp.float32),
        "m1": jnp.zeros((in_planes,), jnp.float32),
        "v1": jnp.ones((in_planes,), jnp.float32),
        "g2": 1.0 + 0.1 * jax.random.normal(ks[2], (planes,), jnp.float32),
        "be2": 0.1 * jax.random.normal(ks[3], (planes,), jnp.float32),
        "m2": jnp.zeros((planes,), jnp.float32),
        "v2": jnp.ones((planes,), jnp.float32),
        # conv1 / conv2 weights (HWIO), no bias
        "w1": 0.1 * jax.random.normal(ks[4], (3, 3, in_planes, planes), jnp.float32),
        "w2": 0.1 * jax.random.normal(ks[5], (3, 3, planes, planes), jnp.float32),
        # shortcut 1x1 conv weight (stored as [Cin, Cout])
        "wsc": 0.1 * jax.random.normal(ks[6], (in_planes, planes), jnp.float32),
        # SE gate: fc1 (planes -> planes//16) and fc2 (planes//16 -> planes), with bias
        "wf1": 0.1 * jax.random.normal(ks[7], (planes, cmid), jnp.float32),
        "bf1": 0.05 * jnp.ones((cmid,), jnp.float32),
        "wf2": 0.1 * jax.random.normal(ks[8], (cmid, planes), jnp.float32),
        "bf2": 0.05 * jnp.ones((planes,), jnp.float32),
    }


if __name__ == "__main__":
    key = jax.random.PRNGKey(0)
    k_x, k_p = jax.random.split(key)

    N, in_planes, H, W = 2, 16, 8, 8
    planes = 32            # in_planes != planes -> shortcut 1x1 conv path is exercised

    # PyTorch-style NCHW input, transposed to the kernel's NHWC layout.
    x_nchw = jax.random.normal(k_x, (N, in_planes, H, W), jnp.float32)
    x_nhwc = jnp.transpose(x_nchw, (0, 2, 3, 1))

    params = make_params(k_p, in_planes, planes)

    out = preact_block_forward(x_nhwc, params, stride=1)
    out = jax.block_until_ready(out)

    ref = preact_block_reference(x_nhwc, params)
    assert out.shape == (N, H, W, planes)
    # bf16 MXU operands + f32 accumulation -> relaxed tolerance vs f32-HIGHEST reference.
    err = jnp.max(jnp.abs(out - ref))
    assert jnp.allclose(out, ref, rtol=5e-2, atol=5e-2), f"max abs err {err}"

    print("KERNEL_OK")
</pallas_src>

<mosaic_0001>
module attributes {stable_mosaic.version = 11 : i64} {
  func.func @_preact_block_kernel(%arg0: i32, %arg1: memref<1x8x8x16xf32, #tpu.memory_space<vmem>>, %arg2: memref<1x1x16xf32, #tpu.memory_space<vmem>>, %arg3: memref<1x1x16xf32, #tpu.memory_space<vmem>>, %arg4: memref<1x32xf32, #tpu.memory_space<vmem>>, %arg5: memref<1x32xf32, #tpu.memory_space<vmem>>, %arg6: memref<144x64xbf16, #tpu.memory_space<vmem>>, %arg7: memref<288x32xbf16, #tpu.memory_space<vmem>>, %arg8: memref<32x2xf32, #tpu.memory_space<vmem>>, %arg9: memref<1x2xf32, #tpu.memory_space<vmem>>, %arg10: memref<2x32xf32, #tpu.memory_space<vmem>>, %arg11: memref<1x32xf32, #tpu.memory_space<vmem>>, %arg12: memref<1x64x32xf32, #tpu.memory_space<vmem>>, %arg13: memref<10x10x16xf32, #tpu.memory_space<vmem>>, %arg14: memref<10x10x32xf32, #tpu.memory_space<vmem>>, %arg15: memref<8x8x144xf32, #tpu.memory_space<vmem>>, %arg16: memref<8x8x288xf32, #tpu.memory_space<vmem>>) attributes {dimension_semantics = [#tpu.dimension_semantics<parallel>], iteration_bounds = array<i64: 2>, scalar_prefetch = 0 : i64, scratch_operands = 4 : i64, tpu.core_type = #tpu.core_type<tc>, window_params = [{transform_indices = @transform_0, window_bounds = array<i64: 1, 8, 8, 16>}, {pipeline_mode = #tpu.pipeline_mode<synchronous>, transform_indices = @transform_1, window_bounds = array<i64: 1, 1, 16>}, {pipeline_mode = #tpu.pipeline_mode<synchronous>, transform_indices = @transform_2, window_bounds = array<i64: 1, 1, 16>}, {pipeline_mode = #tpu.pipeline_mode<synchronous>, transform_indices = @transform_3, window_bounds = array<i64: 1, 32>}, {pipeline_mode = #tpu.pipeline_mode<synchronous>, transform_indices = @transform_4, window_bounds = array<i64: 1, 32>}, {pipeline_mode = #tpu.pipeline_mode<synchronous>, transform_indices = @transform_5, window_bounds = array<i64: 144, 64>}, {pipeline_mode = #tpu.pipeline_mode<synchronous>, transform_indices = @transform_6, window_bounds = array<i64: 288, 32>}, {pipeline_mode = #tpu.pipeline_mode<synchronous>, transform_indices = @transform_7, window_bounds = array<i64: 32, 2>}, {pipeline_mode = #tpu.pipeline_mode<synchronous>, transform_indices = @transform_8, window_bounds = array<i64: 1, 2>}, {pipeline_mode = #tpu.pipeline_mode<synchronous>, transform_indices = @transform_9, window_bounds = array<i64: 2, 32>}, {pipeline_mode = #tpu.pipeline_mode<synchronous>, transform_indices = @transform_10, window_bounds = array<i64: 1, 32>}, {transform_indices = @transform_11, window_bounds = array<i64: 1, 64, 32>}]} {
    %c0 = arith.constant 0 : index
    %c0_0 = arith.constant 0 : index
    %c0_1 = arith.constant 0 : index
    %c0_2 = arith.constant 0 : index
    %0 = vector.load %arg1[%c0, %c0_0, %c0_1, %c0_2] : memref<1x8x8x16xf32, #tpu.memory_space<vmem>>, vector<1x8x8x16xf32>
    %1 = vector.shape_cast %0 : vector<1x8x8x16xf32> to vector<8x8x16xf32>
    %c0_3 = arith.constant 0 : index
    %c0_4 = arith.constant 0 : index
    %c0_5 = arith.constant 0 : index
    %2 = vector.load %arg2[%c0_3, %c0_4, %c0_5] : memref<1x1x16xf32, #tpu.memory_space<vmem>>, vector<1x1x16xf32>
    %3 = vector.broadcast %2 : vector<1x1x16xf32> to vector<8x8x16xf32>
    %4 = arith.mulf %1, %3 : vector<8x8x16xf32>
    %c0_6 = arith.constant 0 : index
    %c0_7 = arith.constant 0 : index
    %c0_8 = arith.constant 0 : index
    %5 = vector.load %arg3[%c0_6, %c0_7, %c0_8] : memref<1x1x16xf32, #tpu.memory_space<vmem>>, vector<1x1x16xf32>
    %6 = vector.broadcast %5 : vector<1x1x16xf32> to vector<8x8x16xf32>
    %7 = arith.addf %4, %6 : vector<8x8x16xf32>
    %cst = arith.constant 0.000000e+00 : f32
    %8 = vector.broadcast %cst : f32 to vector<8x8x16xf32>
    %9 = arith.maximumf %7, %8 : vector<8x8x16xf32>
    %cst_9 = arith.constant 0.000000e+00 : f32
    %10 = vector.broadcast %cst_9 : f32 to vector<1x10x16xf32>
    %c0_10 = arith.constant 0 : index
    %c0_11 = arith.constant 0 : index
    %c0_12 = arith.constant 0 : index
    %11 = vector.load %arg13[%c0_10, %c0_11, %c0_12] : memref<10x10x16xf32, #tpu.memory_space<vmem>>, vector<1x10x16xf32>
    tpu.vector_store %arg13[%c0_10, %c0_11, %c0_12], %10 {strides = array<i32>} : memref<10x10x16xf32, #tpu.memory_space<vmem>>, vector<1x10x16xf32>,
    %cst_13 = arith.constant 0.000000e+00 : f32
    %12 = vector.broadcast %cst_13 : f32 to vector<1x10x16xf32>
    %c9 = arith.constant 9 : index
    %c0_14 = arith.constant 0 : index
    %c0_15 = arith.constant 0 : index
    %13 = vector.load %arg13[%c9, %c0_14, %c0_15] : memref<10x10x16xf32, #tpu.memory_space<vmem>>, vector<1x10x16xf32>
    tpu.vector_store %arg13[%c9, %c0_14, %c0_15], %12 {strides = array<i32>} : memref<10x10x16xf32, #tpu.memory_space<vmem>>, vector<1x10x16xf32>,
    %cst_16 = arith.constant 0.000000e+00 : f32
    %14 = vector.broadcast %cst_16 : f32 to vector<8x1x16xf32>
    %c1 = arith.constant 1 : index
    %c0_17 = arith.constant 0 : index
    %c0_18 = arith.constant 0 : index
    %15 = vector.load %arg13[%c1, %c0_17, %c0_18] : memref<10x10x16xf32, #tpu.memory_space<vmem>>, vector<8x1x16xf32>
    tpu.vector_store %arg13[%c1, %c0_17, %c0_18], %14 {strides = array<i32>} : memref<10x10x16xf32, #tpu.memory_space<vmem>>, vector<8x1x16xf32>,
    %cst_19 = arith.constant 0.000000e+00 : f32
    %16 = vector.broadcast %cst_19 : f32 to vector<8x1x16xf32>
    %c1_20 = arith.constant 1 : index
    %c9_21 = arith.constant 9 : index
    %c0_22 = arith.constant 0 : index
    %17 = vector.load %arg13[%c1_20, %c9_21, %c0_22] : memref<10x10x16xf32, #tpu.memory_space<vmem>>, vector<8x1x16xf32>
    tpu.vector_store %arg13[%c1_20, %c9_21, %c0_22], %16 {strides = array<i32>} : memref<10x10x16xf32, #tpu.memory_space<vmem>>, vector<8x1x16xf32>,
    %c1_23 = arith.constant 1 : index
    %c1_24 = arith.constant 1 : index
    %c0_25 = arith.constant 0 : index
    %18 = vector.load %arg13[%c1_23, %c1_24, %c0_25] : memref<10x10x16xf32, #tpu.memory_space<vmem>>, vector<8x8x16xf32>
    tpu.vector_store %arg13[%c1_23, %c1_24, %c0_25], %9 {strides = array<i32>} : memref<10x10x16xf32, #tpu.memory_space<vmem>>, vector<8x8x16xf32>,
    %c0_26 = arith.constant 0 : index
    %c0_27 = arith.constant 0 : index
    %c0_28 = arith.constant 0 : index
    %19 = vector.load %arg13[%c0_26, %c0_27, %c0_28] : memref<10x10x16xf32, #tpu.memory_space<vmem>>, vector<8x8x16xf32>
    %c0_29 = arith.constant 0 : index
    %c0_30 = arith.constant 0 : index
    %c0_31 = arith.constant 0 : index
    %20 = vector.load %arg15[%c0_29, %c0_30, %c0_31] : memref<8x8x144xf32, #tpu.memory_space<vmem>>, vector<8x8x16xf32>
    tpu.vector_store %arg15[%c0_29, %c0_30, %c0_31], %19 {strides = array<i32>} : memref<8x8x144xf32, #tpu.memory_space<vmem>>, vector<8x8x16xf32>,
    %c0_32 = arith.constant 0 : index
    %c1_33 = arith.constant 1 : index
    %c0_34 = arith.constant 0 : index
    %21 = vector.load %arg13[%c0_32, %c1_33, %c0_34] : memref<10x10x16xf32, #tpu.memory_space<vmem>>, vector<8x8x16xf32>
    %c0_35 = arith.constant 0 : index
    %c0_36 = arith.constant 0 : index
    %c16 = arith.constant 16 : index
    %22 = vector.load %arg15[%c0_35, %c0_36, %c16] : memref<8x8x144xf32, #tpu.memory_space<vmem>>, vector<8x8x16xf32>
    tpu.vector_store %arg15[%c0_35, %c0_36, %c16], %21 {strides = array<i32>} : memref<8x8x144xf32, #tpu.memory_space<vmem>>, vector<8x8x16xf32>,
    %c0_37 = arith.constant 0 : index
    %c2 = arith.constant 2 : index
    %c0_38 = arith.constant 0 : index
    %23 = vector.load %arg13[%c0_37, %c2, %c0_38] : memref<10x10x16xf32, #tpu.memory_space<vmem>>, vector<8x8x16xf32>
    %c0_39 = arith.constant 0 : index
    %c0_40 = arith.constant 0 : index
    %c32 = arith.constant 32 : index
    %24 = vector.load %arg15[%c0_39, %c0_40, %c32] : memref<8x8x144xf32, #tpu.memory_space<vmem>>, vector<8x8x16xf32>
    tpu.vector_store %arg15[%c0_39, %c0_40, %c32], %23 {strides = array<i32>} : memref<8x8x144xf32, #tpu.memory_space<vmem>>, vector<8x8x16xf32>,
    %c1_41 = arith.constant 1 : index
    %c0_42 = arith.constant 0 : index
    %c0_43 = arith.constant 0 : index
    %25 = vector.load %arg13[%c1_41, %c0_42, %c0_43] : memref<10x10x16xf32, #tpu.memory_space<vmem>>, vector<8x8x16xf32>
    %c0_44 = arith.constant 0 : index
    %c0_45 = arith.constant 0 : index
    %c48 = arith.constant 48 : index
    %26 = vector.load %arg15[%c0_44, %c0_45, %c48] : memref<8x8x144xf32, #tpu.memory_space<vmem>>, vector<8x8x16xf32>
    tpu.vector_store %arg15[%c0_44, %c0_45, %c48], %25 {strides = array<i32>} : memref<8x8x144xf32, #tpu.memory_space<vmem>>, vector<8x8x16xf32>,
    %c1_46 = arith.constant 1 : index
    %c1_47 = arith.constant 1 : index
    %c0_48 = arith.constant 0 : index
    %27 = vector.load %arg13[%c1_46, %c1_47, %c0_48] : memref<10x10x16xf32, #tpu.memory_space<vmem>>, vector<8x8x16xf32>
    %c0_49 = arith.constant 0 : index
    %c0_50 = arith.constant 0 : index
    %c64 = arith.constant 64 : index
    %28 = vector.load %arg15[%c0_49, %c0_50, %c64] : memref<8x8x144xf32, #tpu.memory_space<vmem>>, vector<8x8x16xf32>
    tpu.vector_store %arg15[%c0_49, %c0_50, %c64], %27 {strides = array<i32>} : memref<8x8x144xf32, #tpu.memory_space<vmem>>, vector<8x8x16xf32>,
    %c1_51 = arith.constant 1 : index
    %c2_52 = arith.constant 2 : index
    %c0_53 = arith.constant 0 : index
    %29 = vector.load %arg13[%c1_51, %c2_52, %c0_53] : memref<10x10x16xf32, #tpu.memory_space<vmem>>, vector<8x8x16xf32>
    %c0_54 = arith.constant 0 : index
    %c0_55 = arith.constant 0 : index
    %c80 = arith.constant 80 : index
    %30 = vector.load %arg15[%c0_54, %c0_55, %c80] : memref<8x8x144xf32, #tpu.memory_space<vmem>>, vector<8x8x16xf32>
    tpu.vector_store %arg15[%c0_54, %c0_55, %c80], %29 {strides = array<i32>} : memref<8x8x144xf32, #tpu.memory_space<vmem>>, vector<8x8x16xf32>,
    %c2_56 = arith.constant 2 : index
    %c0_57 = arith.constant 0 : index
    %c0_58 = arith.constant 0 : index
    %31 = vector.load %arg13[%c2_56, %c0_57, %c0_58] : memref<10x10x16xf32, #tpu.memory_space<vmem>>, vector<8x8x16xf32>
    %c0_59 = arith.constant 0 : index
    %c0_60 = arith.constant 0 : index
    %c96 = arith.constant 96 : index
    %32 = vector.load %arg15[%c0_59, %c0_60, %c96] : memref<8x8x144xf32, #tpu.memory_space<vmem>>, vector<8x8x16xf32>
    tpu.vector_store %arg15[%c0_59, %c0_60, %c96], %31 {strides = array<i32>} : memref<8x8x144xf32, #tpu.memory_space<vmem>>, vector<8x8x16xf32>,
    %c2_61 = arith.constant 2 : index
    %c1_62 = arith.constant 1 : index
    %c0_63 = arith.constant 0 : index
    %33 = vector.load %arg13[%c2_61, %c1_62, %c0_63] : memref<10x10x16xf32, #tpu.memory_space<vmem>>, vector<8x8x16xf32>
    %c0_64 = arith.constant 0 : index
    %c0_65 = arith.constant 0 : index
    %c112 = arith.constant 112 : index
    %34 = vector.load %arg15[%c0_64, %c0_65, %c112] : memref<8x8x144xf32, #tpu.memory_space<vmem>>, vector<8x8x16xf32>
    tpu.vector_store %arg15[%c0_64, %c0_65, %c112], %33 {strides = array<i32>} : memref<8x8x144xf32, #tpu.memory_space<vmem>>, vector<8x8x16xf32>,
    %c2_66 = arith.constant 2 : index
    %c2_67 = arith.constant 2 : index
    %c0_68 = arith.constant 0 : index
    %35 = vector.load %arg13[%c2_66, %c2_67, %c0_68] : memref<10x10x16xf32, #tpu.memory_space<vmem>>, vector<8x8x16xf32>
    %c0_69 = arith.constant 0 : index
    %c0_70 = arith.constant 0 : index
    %c128 = arith.constant 128 : index
    %36 = vector.load %arg15[%c0_69, %c0_70, %c128] : memref<8x8x144xf32, #tpu.memory_space<vmem>>, vector<8x8x16xf32>
    tpu.vector_store %arg15[%c0_69, %c0_70, %c128], %35 {strides = array<i32>} : memref<8x8x144xf32, #tpu.memory_space<vmem>>, vector<8x8x16xf32>,
    %c0_71 = arith.constant 0 : index
    %c0_72 = arith.constant 0 : index
    %c0_73 = arith.constant 0 : index
    %37 = vector.load %arg15[%c0_71, %c0_72, %c0_73] : memref<8x8x144xf32, #tpu.memory_space<vmem>>, vector<8x8x144xf32>
    %38 = vector.shape_cast %37 : vector<8x8x144xf32> to vector<64x144xf32>
    %39 = arith.truncf %38 : vector<64x144xf32> to vector<64x144xbf16>
    %c0_74 = arith.constant 0 : index
    %c0_75 = arith.constant 0 : index
    %40 = vector.load %arg6[%c0_74, %c0_75] : memref<144x64xbf16, #tpu.memory_space<vmem>>, vector<144x64xbf16>
    %cst_76 = arith.constant dense<0.000000e+00> : vector<64x64xf32>
    %41 = tpu.matmul %39, %40, %cst_76 {dimension_numbers = #tpu.dot_dimension_numbers<[1], [0], [0], [1], [0, 0, 1, 1], [], []>} : vector<64x144xbf16>, vector<144x64xbf16>, vector<64x64xf32> -> vector<64x64xf32>
    %42 = vector.extract_strided_slice %41 {offsets = [0, 0], sizes = [64, 32], strides = [1, 1]} : vector<64x64xf32> to vector<64x32xf32>
    %c0_77 = arith.constant 0 : index
    %c0_78 = arith.constant 0 : index
    %43 = vector.load %arg4[%c0_77, %c0_78] : memref<1x32xf32, #tpu.memory_space<vmem>>, vector<1x32xf32>
    %44 = vector.broadcast %43 : vector<1x32xf32> to vector<64x32xf32>
    %45 = arith.mulf %42, %44 : vector<64x32xf32>
    %c0_79 = arith.constant 0 : index
    %c0_80 = arith.constant 0 : index
    %46 = vector.load %arg5[%c0_79, %c0_80] : memref<1x32xf32, #tpu.memory_space<vmem>>, vector<1x32xf32>
    %47 = vector.broadcast %46 : vector<1x32xf32> to vector<64x32xf32>
    %48 = arith.addf %45, %47 : vector<64x32xf32>
    %cst_81 = arith.constant 0.000000e+00 : f32
    %49 = vector.broadcast %cst_81 : f32 to vector<64x32xf32>
    %50 = arith.maximumf %48, %49 : vector<64x32xf32>
    %cst_82 = arith.constant 0.000000e+00 : f32
    %51 = vector.broadcast %cst_82 : f32 to vector<1x10x32xf32>
    %c0_83 = arith.constant 0 : index
    %c0_84 = arith.constant 0 : index
    %c0_85 = arith.constant 0 : index
    %52 = vector.load %arg14[%c0_83, %c0_84, %c0_85] : memref<10x10x32xf32, #tpu.memory_space<vmem>>, vector<1x10x32xf32>
    tpu.vector_store %arg14[%c0_83, %c0_84, %c0_85], %51 {strides = array<i32>} : memref<10x10x32xf32, #tpu.memory_space<vmem>>, vector<1x10x32xf32>,
    %cst_86 = arith.constant 0.000000e+00 : f32
    %53 = vector.broadcast %cst_86 : f32 to vector<1x10x32xf32>
    %c9_87 = arith.constant 9 : index
    %c0_88 = arith.constant 0 : index
    %c0_89 = arith.constant 0 : index
    %54 = vector.load %arg14[%c9_87, %c0_88, %c0_89] : memref<10x10x32xf32, #tpu.memory_space<vmem>>, vector<1x10x32xf32>
    tpu.vector_store %arg14[%c9_87, %c0_88, %c0_89], %53 {strides = array<i32>} : memref<10x10x32xf32, #tpu.memory_space<vmem>>, vector<1x10x32xf32>,
    %cst_90 = arith.constant 0.000000e+00 : f32
    %55 = vector.broadcast %cst_90 : f32 to vector<8x1x32xf32>
    %c1_91 = arith.constant 1 : index
    %c0_92 = arith.constant 0 : index
    %c0_93 = arith.constant 0 : index
    %56 = vector.load %arg14[%c1_91, %c0_92, %c0_93] : memref<10x10x32xf32, #tpu.memory_space<vmem>>, vector<8x1x32xf32>
    tpu.vector_store %arg14[%c1_91, %c0_92, %c0_93], %55 {strides = array<i32>} : memref<10x10x32xf32, #tpu.memory_space<vmem>>, vector<8x1x32xf32>,
    %cst_94 = arith.constant 0.000000e+00 : f32
    %57 = vector.broadcast %cst_94 : f32 to vector<8x1x32xf32>
    %c1_95 = arith.constant 1 : index
    %c9_96 = arith.constant 9 : index
    %c0_97 = arith.constant 0 : index
    %58 = vector.load %arg14[%c1_95, %c9_96, %c0_97] : memref<10x10x32xf32, #tpu.memory_space<vmem>>, vector<8x1x32xf32>
    tpu.vector_store %arg14[%c1_95, %c9_96, %c0_97], %57 {strides = array<i32>} : memref<10x10x32xf32, #tpu.memory_space<vmem>>, vector<8x1x32xf32>,
    %59 = vector.shape_cast %50 : vector<64x32xf32> to vector<8x8x32xf32>
    %c1_98 = arith.constant 1 : index
    %c1_99 = arith.constant 1 : index
    %c0_100 = arith.constant 0 : index
    %60 = vector.load %arg14[%c1_98, %c1_99, %c0_100] : memref<10x10x32xf32, #tpu.memory_space<vmem>>, vector<8x8x32xf32>
    tpu.vector_store %arg14[%c1_98, %c1_99, %c0_100], %59 {strides = array<i32>} : memref<10x10x32xf32, #tpu.memory_space<vmem>>, vector<8x8x32xf32>,
    %c0_101 = arith.constant 0 : index
    %c0_102 = arith.constant 0 : index
    %c0_103 = arith.constant 0 : index
    %61 = vector.load %arg14[%c0_101, %c0_102, %c0_103] : memref<10x10x32xf32, #tpu.memory_space<vmem>>, vector<8x8x32xf32>
    %c0_104 = arith.constant 0 : index
    %c0_105 = arith.constant 0 : index
    %c0_106 = arith.constant 0 : index
    %62 = vector.load %arg16[%c0_104, %c0_105, %c0_106] : memref<8x8x288xf32, #tpu.memory_space<vmem>>, vector<8x8x32xf32>
    tpu.vector_store %arg16[%c0_104, %c0_105, %c0_106], %61 {strides = array<i32>} : memref<8x8x288xf32, #tpu.memory_space<vmem>>, vector<8x8x32xf32>,
    %c0_107 = arith.constant 0 : index
    %c1_108 = arith.constant 1 : index
    %c0_109 = arith.constant 0 : index
    %63 = vector.load %arg14[%c0_107, %c1_108, %c0_109] : memref<10x10x32xf32, #tpu.memory_space<vmem>>, vector<8x8x32xf32>
    %c0_110 = arith.constant 0 : index
    %c0_111 = arith.constant 0 : index
    %c32_112 = arith.constant 32 : index
    %64 = vector.load %arg16[%c0_110, %c0_111, %c32_112] : memref<8x8x288xf32, #tpu.memory_space<vmem>>, vector<8x8x32xf32>
    tpu.vector_store %arg16[%c0_110, %c0_111, %c32_112], %63 {strides = array<i32>} : memref<8x8x288xf32, #tpu.memory_space<vmem>>, vector<8x8x32xf32>,
    %c0_113 = arith.constant 0 : index
    %c2_114 = arith.constant 2 : index
    %c0_115 = arith.constant 0 : index
    %65 = vector.load %arg14[%c0_113, %c2_114, %c0_115] : memref<10x10x32xf32, #tpu.memory_space<vmem>>, vector<8x8x32xf32>
    %c0_116 = arith.constant 0 : index
    %c0_117 = arith.constant 0 : index
    %c64_118 = arith.constant 64 : index
    %66 = vector.load %arg16[%c0_116, %c0_117, %c64_118] : memref<8x8x288xf32, #tpu.memory_space<vmem>>, vector<8x8x32xf32>
    tpu.vector_store %arg16[%c0_116, %c0_117, %c64_118], %65 {strides = array<i32>} : memref<8x8x288xf32, #tpu.memory_space<vmem>>, vector<8x8x32xf32>,
    %c1_119 = arith.constant 1 : index
    %c0_120 = arith.constant 0 : index
    %c0_121 = arith.constant 0 : index
    %67 = vector.load %arg14[%c1_119, %c0_120, %c0_121] : memref<10x10x32xf32, #tpu.memory_space<vmem>>, vector<8x8x32xf32>
    %c0_122 = arith.constant 0 : index
    %c0_123 = arith.constant 0 : index
    %c96_124 = arith.constant 96 : index
    %68 = vector.load %arg16[%c0_122, %c0_123, %c96_124] : memref<8x8x288xf32, #tpu.memory_space<vmem>>, vector<8x8x32xf32>
    tpu.vector_store %arg16[%c0_122, %c0_123, %c96_124], %67 {strides = array<i32>} : memref<8x8x288xf32, #tpu.memory_space<vmem>>, vector<8x8x32xf32>,
    %c1_125 = arith.constant 1 : index
    %c1_126 = arith.constant 1 : index
    %c0_127 = arith.constant 0 : index
    %69 = vector.load %arg14[%c1_125, %c1_126, %c0_127] : memref<10x10x32xf32, #tpu.memory_space<vmem>>, vector<8x8x32xf32>
    %c0_128 = arith.constant 0 : index
    %c0_129 = arith.constant 0 : index
    %c128_130 = arith.constant 128 : index
    %70 = vector.load %arg16[%c0_128, %c0_129, %c128_130] : memref<8x8x288xf32, #tpu.memory_space<vmem>>, vector<8x8x32xf32>
    tpu.vector_store %arg16[%c0_128, %c0_129, %c128_130], %69 {strides = array<i32>} : memref<8x8x288xf32, #tpu.memory_space<vmem>>, vector<8x8x32xf32>,
    %c1_131 = arith.constant 1 : index
    %c2_132 = arith.constant 2 : index
    %c0_133 = arith.constant 0 : index
    %71 = vector.load %arg14[%c1_131, %c2_132, %c0_133] : memref<10x10x32xf32, #tpu.memory_space<vmem>>, vector<8x8x32xf32>
    %c0_134 = arith.constant 0 : index
    %c0_135 = arith.constant 0 : index
    %c160 = arith.constant 160 : index
    %72 = vector.load %arg16[%c0_134, %c0_135, %c160] : memref<8x8x288xf32, #tpu.memory_space<vmem>>, vector<8x8x32xf32>
    tpu.vector_store %arg16[%c0_134, %c0_135, %c160], %71 {strides = array<i32>} : memref<8x8x288xf32, #tpu.memory_space<vmem>>, vector<8x8x32xf32>,
    %c2_136 = arith.constant 2 : index
    %c0_137 = arith.constant 0 : index
    %c0_138 = arith.constant 0 : index
    %73 = vector.load %arg14[%c2_136, %c0_137, %c0_138] : memref<10x10x32xf32, #tpu.memory_space<vmem>>, vector<8x8x32xf32>
    %c0_139 = arith.constant 0 : index
    %c0_140 = arith.constant 0 : index
    %c192 = arith.constant 192 : index
    %74 = vector.load %arg16[%c0_139, %c0_140, %c192] : memref<8x8x288xf32, #tpu.memory_space<vmem>>, vector<8x8x32xf32>
    tpu.vector_store %arg16[%c0_139, %c0_140, %c192], %73 {strides = array<i32>} : memref<8x8x288xf32, #tpu.memory_space<vmem>>, vector<8x8x32xf32>,
    %c2_141 = arith.constant 2 : index
    %c1_142 = arith.constant 1 : index
    %c0_143 = arith.constant 0 : index
    %75 = vector.load %arg14[%c2_141, %c1_142, %c0_143] : memref<10x10x32xf32, #tpu.memory_space<vmem>>, vector<8x8x32xf32>
    %c0_144 = arith.constant 0 : index
    %c0_145 = arith.constant 0 : index
    %c224 = arith.constant 224 : index
    %76 = vector.load %arg16[%c0_144, %c0_145, %c224] : memref<8x8x288xf32, #tpu.memory_space<vmem>>, vector<8x8x32xf32>
    tpu.vector_store %arg16[%c0_144, %c0_145, %c224], %75 {strides = array<i32>} : memref<8x8x288xf32, #tpu.memory_space<vmem>>, vector<8x8x32xf32>,
    %c2_146 = arith.constant 2 : index
    %c2_147 = arith.constant 2 : index
    %c0_148 = arith.constant 0 : index
    %77 = vector.load %arg14[%c2_146, %c2_147, %c0_148] : memref<10x10x32xf32, #tpu.memory_space<vmem>>, vector<8x8x32xf32>
    %c0_149 = arith.constant 0 : index
    %c0_150 = arith.constant 0 : index
    %c256 = arith.constant 256 : index
    %78 = vector.load %arg16[%c0_149, %c0_150, %c256] : memref<8x8x288xf32, #tpu.memory_space<vmem>>, vector<8x8x32xf32>
    tpu.vector_store %arg16[%c0_149, %c0_150, %c256], %77 {strides = array<i32>} : memref<8x8x288xf32, #tpu.memory_space<vmem>>, vector<8x8x32xf32>,
    %c0_151 = arith.constant 0 : index
    %c0_152 = arith.constant 0 : index
    %c0_153 = arith.constant 0 : index
    %79 = vector.load %arg16[%c0_151, %c0_152, %c0_153] : memref<8x8x288xf32, #tpu.memory_space<vmem>>, vector<8x8x288xf32>
    %80 = vector.shape_cast %79 : vector<8x8x288xf32> to vector<64x288xf32>
    %81 = arith.truncf %80 : vector<64x288xf32> to vector<64x288xbf16>
    %c0_154 = arith.constant 0 : index
    %c0_155 = arith.constant 0 : index
    %82 = vector.load %arg7[%c0_154, %c0_155] : memref<288x32xbf16, #tpu.memory_space<vmem>>, vector<288x32xbf16>
    %cst_156 = arith.constant dense<0.000000e+00> : vector<64x32xf32>
    %83 = tpu.matmul %81, %82, %cst_156 {dimension_numbers = #tpu.dot_dimension_numbers<[1], [0], [0], [1], [0, 0, 1, 1], [], []>} : vector<64x288xbf16>, vector<288x32xbf16>, vector<64x32xf32> -> vector<64x32xf32>
    %cst_157 = arith.constant dense<0.000000e+00> : vector<32xf32>
    %84 = vector.multi_reduction <add>, %83, %cst_157 [0] : vector<64x32xf32> to vector<32xf32>
    %85 = vector.shape_cast %84 : vector<32xf32> to vector<1x32xf32>
    %cst_158 = arith.constant 6.400000e+01 : f32
    %86 = vector.broadcast %cst_158 : f32 to vector<1x32xf32>
    %87 = arith.divf %85, %86 : vector<1x32xf32>
    %c0_159 = arith.constant 0 : index
    %c0_160 = arith.constant 0 : index
    %88 = vector.load %arg8[%c0_159, %c0_160] : memref<32x2xf32, #tpu.memory_space<vmem>>, vector<32x2xf32>
    %cst_161 = arith.constant dense<0.000000e+00> : vector<1x2xf32>
    %89 = tpu.matmul %87, %88, %cst_161 {dimension_numbers = #tpu.dot_dimension_numbers<[1], [0], [0], [1], [0, 0, 1, 1], [], []>} : vector<1x32xf32>, vector<32x2xf32>, vector<1x2xf32> -> vector<1x2xf32>
    %c0_162 = arith.constant 0 : index
    %c0_163 = arith.constant 0 : index
    %90 = vector.load %arg9[%c0_162, %c0_163] : memref<1x2xf32, #tpu.memory_space<vmem>>, vector<1x2xf32>
    %91 = arith.addf %89, %90 : vector<1x2xf32>
    %cst_164 = arith.constant 0.000000e+00 : f32
    %92 = vector.broadcast %cst_164 : f32 to vector<1x2xf32>
    %93 = arith.maximumf %91, %92 : vector<1x2xf32>
    %c0_165 = arith.constant 0 : index
    %c0_166 = arith.constant 0 : index
    %94 = vector.load %arg10[%c0_165, %c0_166] : memref<2x32xf32, #tpu.memory_space<vmem>>, vector<2x32xf32>
    %cst_167 = arith.constant dense<0.000000e+00> : vector<1x32xf32>
    %95 = tpu.matmul %93, %94, %cst_167 {dimension_numbers = #tpu.dot_dimension_numbers<[1], [0], [0], [1], [0, 0, 1, 1], [], []>} : vector<1x2xf32>, vector<2x32xf32>, vector<1x32xf32> -> vector<1x32xf32>
    %c0_168 = arith.constant 0 : index
    %c0_169 = arith.constant 0 : index
    %96 = vector.load %arg11[%c0_168, %c0_169] : memref<1x32xf32, #tpu.memory_space<vmem>>, vector<1x32xf32>
    %97 = arith.addf %95, %96 : vector<1x32xf32>
    %98 = arith.negf %97 : vector<1x32xf32>
    %99 = math.exp %98 : vector<1x32xf32>
    %cst_170 = arith.constant 1.000000e+00 : f32
    %100 = vector.broadcast %cst_170 : f32 to vector<1x32xf32>
    %101 = arith.addf %100, %99 : vector<1x32xf32>
    %102 = arith.divf %100, %101 : vector<1x32xf32>
    %103 = vector.broadcast %102 : vector<1x32xf32> to vector<64x32xf32>
    %104 = arith.mulf %83, %103 : vector<64x32xf32>
    %105 = vector.extract_strided_slice %41 {offsets = [0, 32], sizes = [64, 32], strides = [1, 1]} : vector<64x64xf32> to vector<64x32xf32>
    %106 = arith.addf %104, %105 : vector<64x32xf32>
    %c0_171 = arith.constant 0 : index
    %c0_172 = arith.constant 0 : index
    %c0_173 = arith.constant 0 : index
    %107 = vector.load %arg12[%c0_171, %c0_172, %c0_173] : memref<1x64x32xf32, #tpu.memory_space<vmem>>, vector<1x64x32xf32>
    %108 = vector.shape_cast %107 : vector<1x64x32xf32> to vector<64x32xf32>
    %109 = vector.shape_cast %106 : vector<64x32xf32> to vector<1x64x32xf32>
    tpu.vector_store %arg12[%c0_171, %c0_172, %c0_173], %109 {strides = array<i32>} : memref<1x64x32xf32, #tpu.memory_space<vmem>>, vector<1x64x32xf32>,
    return
  }
  func.func @transform_0(%arg0: i32) -> (i32, i32, i32, i32) {
    %c0_i32 = arith.constant 0 : i32
    %c0_i32_0 = arith.constant 0 : i32
    %c0_i32_1 = arith.constant 0 : i32
    %c0_i32_2 = arith.constant 0 : i32
    return %arg0, %c0_i32, %c0_i32_0, %c0_i32_1 : i32, i32, i32, i32
  }
  func.func @transform_1(%arg0: i32) -> (i32, i32, i32) {
    %c0_i32 = arith.constant 0 : i32
    %c0_i32_0 = arith.constant 0 : i32
    %c0_i32_1 = arith.constant 0 : i32
    %c0_i32_2 = arith.constant 0 : i32
    return %c0_i32, %c0_i32_0, %c0_i32_1 : i32, i32, i32
  }
  func.func @transform_2(%arg0: i32) -> (i32, i32, i32) {
    %c0_i32 = arith.constant 0 : i32
    %c0_i32_0 = arith.constant 0 : i32
    %c0_i32_1 = arith.constant 0 : i32
    %c0_i32_2 = arith.constant 0 : i32
    return %c0_i32, %c0_i32_0, %c0_i32_1 : i32, i32, i32
  }
  func.func @transform_3(%arg0: i32) -> (i32, i32) {
    %c0_i32 = arith.constant 0 : i32
    %c0_i32_0 = arith.constant 0 : i32
    %c0_i32_1 = arith.constant 0 : i32
    return %c0_i32, %c0_i32_0 : i32, i32
  }
  func.func @transform_4(%arg0: i32) -> (i32, i32) {
    %c0_i32 = arith.constant 0 : i32
    %c0_i32_0 = arith.constant 0 : i32
    %c0_i32_1 = arith.constant 0 : i32
    return %c0_i32, %c0_i32_0 : i32, i32
  }
  func.func @transform_5(%arg0: i32) -> (i32, i32) {
    %c0_i32 = arith.constant 0 : i32
    %c0_i32_0 = arith.constant 0 : i32
    %c0_i32_1 = arith.constant 0 : i32
    return %c0_i32, %c0_i32_0 : i32, i32
  }
  func.func @transform_6(%arg0: i32) -> (i32, i32) {
    %c0_i32 = arith.constant 0 : i32
    %c0_i32_0 = arith.constant 0 : i32
    %c0_i32_1 = arith.constant 0 : i32
    return %c0_i32, %c0_i32_0 : i32, i32
  }
  func.func @transform_7(%arg0: i32) -> (i32, i32) {
    %c0_i32 = arith.constant 0 : i32
    %c0_i32_0 = arith.constant 0 : i32
    %c0_i32_1 = arith.constant 0 : i32
    return %c0_i32, %c0_i32_0 : i32, i32
  }
  func.func @transform_8(%arg0: i32) -> (i32, i32) {
    %c0_i32 = arith.constant 0 : i32
    %c0_i32_0 = arith.constant 0 : i32
    %c0_i32_1 = arith.constant 0 : i32
    return %c0_i32, %c0_i32_0 : i32, i32
  }
  func.func @transform_9(%arg0: i32) -> (i32, i32) {
    %c0_i32 = arith.constant 0 : i32
    %c0_i32_0 = arith.constant 0 : i32
    %c0_i32_1 = arith.constant 0 : i32
    return %c0_i32, %c0_i32_0 : i32, i32
  }
  func.func @transform_10(%arg0: i32) -> (i32, i32) {
    %c0_i32 = arith.constant 0 : i32
    %c0_i32_0 = arith.constant 0 : i32
    %c0_i32_1 = arith.constant 0 : i32
    return %c0_i32, %c0_i32_0 : i32, i32
  }
  func.func @transform_11(%arg0: i32) -> (i32, i32, i32) {
    %c0_i32 = arith.constant 0 : i32
    %c0_i32_0 = arith.constant 0 : i32
    %c0_i32_1 = arith.constant 0 : i32
    return %arg0, %c0_i32, %c0_i32_0 : i32, i32, i32
  }
}

</mosaic_0001>

<llo_original>
// kernel: tpu_custom_call.1
$region0: #{tpu_custom_call.1}
  #allocation0 [shape = 'u32[]', space=smem, size = 0x4, offset = 0x4, fixed_abs, tag = 'smem constant byte address 0x4 - core index']
  #allocation1 [shape = 'u32[144,128]{1,0:T(1,128)}', space=vmem, size = 0x12000, scoped, tag = 'internal scratch']
  #allocation2 [shape = 'f32[10,10,16]{2,1,0:T(8,128)}', space=vmem, size = 0x14000, scoped, tag = 'scratch operand']
  #allocation3 [shape = 'f32[10,10,32]{2,1,0:T(8,128)}', space=vmem, size = 0x14000, scoped, tag = 'scratch operand']
  #allocation4 [shape = 'f32[8,8,144]{2,1,0:T(8,128)}', space=vmem, size = 0x10000, scoped, tag = 'scratch operand']
  #allocation5 [shape = 'f32[8,8,288]{2,1,0:T(8,128)}', space=vmem, size = 0x18000, scoped, tag = 'scratch operand']
  %s0 = inlined_call_operand.vmem [shape: f32[2,8,8,16], index: 0, kind: input, shape index: {}]
  %s1 = inlined_call_operand.vmem [shape: f32[1,1,16], index: 1, kind: input, shape index: {}]
  %s2 = inlined_call_operand.vmem [shape: f32[1,1,16], index: 2, kind: input, shape index: {}]
  %s3 = inlined_call_operand.vmem [shape: f32[1,32], index: 3, kind: input, shape index: {}]
  %s4 = inlined_call_operand.vmem [shape: f32[1,32], index: 4, kind: input, shape index: {}]
  %s5 = inlined_call_operand.vmem [shape: bf16[144,64], index: 5, kind: input, shape index: {}]
  %s6 = inlined_call_operand.vmem [shape: bf16[288,32], index: 6, kind: input, shape index: {}]
  %s7 = inlined_call_operand.vmem [shape: f32[32,2], index: 7, kind: input, shape index: {}]
  %s8 = inlined_call_operand.vmem [shape: f32[1,2], index: 8, kind: input, shape index: {}]
  %s9 = inlined_call_operand.vmem [shape: f32[2,32], index: 9, kind: input, shape index: {}]
  %s10 = inlined_call_operand.vmem [shape: f32[1,32], index: 10, kind: input, shape index: {}]
  %s11 = inlined_call_operand.vmem [shape: f32[2,64,32], index: 11, kind: output, shape index: {}]
  %s12 = sld [smem:[#allocation0]]
  $region77: #{tpu_custom_call.1} parent=0
    _
  %s14 = ssub.s32 1, %s12
  %s15 = scalar_select 0, %s14, %s12
  loop: start=0, step=1, limit=4
  $region2: #{tpu_custom_call.1} parent=0 // loop_pre_header
    _
  $region3: #{tpu_custom_call.1} parent=0 // loop_header
    %s17 = sphi 0, %s21
    %p18 = scmp.ge.s32.totalorder %s17, 4
    %s27 = sphi 0, %s29
    %s30 = sphi 0, %s27
    %s31 = sphi 0, %s30
    %s47 = sphi 0, %s31
    %s51 = sphi 0, %s51
    %s53 = sphi 0, %s51
    %s54 = sphi 0, %s53
    %s68 = sphi 0, %s54
    %s72 = sphi 0, %s72
    %s74 = sphi 0, %s72
    %s75 = sphi 0, %s74
    %s89 = sphi 0, %s75
    %s93 = sphi 0, %s93
    %s95 = sphi 0, %s93
    %s96 = sphi 0, %s95
    %s110 = sphi 0, %s96
    %s114 = sphi 0, %s114
    %s116 = sphi 0, %s114
    %s117 = sphi 0, %s116
    %s131 = sphi 0, %s117
    %s135 = sphi 0, %s135
    %s137 = sphi 0, %s135
    %s138 = sphi 0, %s137
    %s152 = sphi 0, %s138
    %s156 = sphi 0, %s156
    %s158 = sphi 0, %s156
    %s159 = sphi 0, %s158
    %s173 = sphi 0, %s159
    %s177 = sphi 0, %s177
    %s179 = sphi 0, %s177
    %s180 = sphi 0, %s179
    %s194 = sphi 0, %s180
    %s198 = sphi 0, %s198
    %s200 = sphi 0, %s198
    %s201 = sphi 0, %s200
    %s215 = sphi 0, %s201
    %s219 = sphi 0, %s219
    %s221 = sphi 0, %s219
    %s222 = sphi 0, %s221
    %s236 = sphi 0, %s222
    %s240 = sphi 0, %s240
    %s242 = sphi 0, %s240
    %s243 = sphi 0, %s242
    %s257 = sphi 0, %s243
    %s263 = sphi 0, %s265
    %s266 = sphi 0, %s263
    %s267 = sphi 0, %s266
    %s283 = sphi 0, %s267
  $region4: #{tpu_custom_call.1} parent=0 // loop_header_branch
    %20 = sbr.rel (%p18) target = $region8
  $region5: #{tpu_custom_call.1} parent=0 // loop_body
    %s22 = ssub.s32 %s17, 1
    %s23 = ssub.s32 %s17, 2
    %s24 = sadd.s32 %s17, 1
    %s25 = ssub.s32 %s17, %s24
    %p26 = scmp.eq.s32.totalorder %s25, 0
    %s28 = sadd.s32 %s27, 1
    %s29 = scalar_select %p26, %s27, %s28
    %p32 = pneg %p26
    %p33 = scmp.eq.s32.totalorder %s17, 1
    %p34 = por %p32, %p33
    %p35 = scmp.ne.s32.totalorder %s27, %s30
    %p36 = scmp.eq.s32.totalorder %s17, 0
    %p37 = por %p35, %p36
    %p38 = scmp.ne.s32.totalorder %s27, %s30
    %p39 = scmp.eq.s32.totalorder %s22, 1
    %p40 = por %p38, %p39
    %p41 = scmp.ne.s32.totalorder %s30, %s31
    %p42 = scmp.eq.s32.totalorder %s22, 0
    %p43 = por %p41, %p42
    %p44 = scmp.ne.s32.totalorder %s30, %s31
    %p45 = scmp.eq.s32.totalorder %s23, 1
    %p46 = por %p44, %p45
    %p48 = scmp.ne.s32.totalorder %s31, %s47
    %p49 = scmp.eq.s32.totalorder %s23, 0
    %p50 = por %p48, %p49
    %s52 = sadd.s32 %s51, 1
    %p55 = scmp.eq.s32.totalorder %s17, 1
    %p56 = scmp.ne.s32.totalorder %s51, %s53
    %p57 = scmp.eq.s32.totalorder %s17, 0
    %p58 = por %p56, %p57
    %p59 = scmp.ne.s32.totalorder %s51, %s53
    %p60 = scmp.eq.s32.totalorder %s22, 1
    %p61 = por %p59, %p60
    %p62 = scmp.ne.s32.totalorder %s53, %s54
    %p63 = scmp.eq.s32.totalorder %s22, 0
    %p64 = por %p62, %p63
    %p65 = scmp.ne.s32.totalorder %s53, %s54
    %p66 = scmp.eq.s32.totalorder %s23, 1
    %p67 = por %p65, %p66
    %p69 = scmp.ne.s32.totalorder %s54, %s68
    %p70 = scmp.eq.s32.totalorder %s23, 0
    %p71 = por %p69, %p70
    %s73 = sadd.s32 %s72, 1
    %p76 = scmp.eq.s32.totalorder %s17, 1
    %p77 = scmp.ne.s32.totalorder %s72, %s74
    %p78 = scmp.eq.s32.totalorder %s17, 0
    %p79 = por %p77, %p78
    %p80 = scmp.ne.s32.totalorder %s72, %s74
    %p81 = scmp.eq.s32.totalorder %s22, 1
    %p82 = por %p80, %p81
    %p83 = scmp.ne.s32.totalorder %s74, %s75
    %p84 = scmp.eq.s32.totalorder %s22, 0
    %p85 = por %p83, %p84
    %p86 = scmp.ne.s32.totalorder %s74, %s75
    %p87 = scmp.eq.s32.totalorder %s23, 1
    %p88 = por %p86, %p87
    %p90 = scmp.ne.s32.totalorder %s75, %s89
    %p91 = scmp.eq.s32.totalorder %s23, 0
    %p92 = por %p90, %p91
    %s94 = sadd.s32 %s93, 1
    %p97 = scmp.eq.s32.totalorder %s17, 1
    %p98 = scmp.ne.s32.totalorder %s93, %s95
    %p99 = scmp.eq.s32.totalorder %s17, 0
    %p100 = por %p98, %p99
    %p101 = scmp.ne.s32.totalorder %s93, %s95
    %p102 = scmp.eq.s32.totalorder %s22, 1
    %p103 = por %p101, %p102
    %p104 = scmp.ne.s32.totalorder %s95, %s96
    %p105 = scmp.eq.s32.totalorder %s22, 0
    %p106 = por %p104, %p105
    %p107 = scmp.ne.s32.totalorder %s95, %s96
    %p108 = scmp.eq.s32.totalorder %s23, 1
    %p109 = por %p107, %p108
    %p111 = scmp.ne.s32.totalorder %s96, %s110
    %p112 = scmp.eq.s32.totalorder %s23, 0
    %p113 = por %p111, %p112
    %s115 = sadd.s32 %s114, 1
    %p118 = scmp.eq.s32.totalorder %s17, 1
    %p119 = scmp.ne.s32.totalorder %s114, %s116
    %p120 = scmp.eq.s32.totalorder %s17, 0
    %p121 = por %p119, %p120
    %p122 = scmp.ne.s32.totalorder %s114, %s116
    %p123 = scmp.eq.s32.totalorder %s22, 1
    %p124 = por %p122, %p123
    %p125 = scmp.ne.s32.totalorder %s116, %s117
    %p126 = scmp.eq.s32.totalorder %s22, 0
    %p127 = por %p125, %p126
    %p128 = scmp.ne.s32.totalorder %s116, %s117
    %p129 = scmp.eq.s32.totalorder %s23, 1
    %p130 = por %p128, %p129
    %p132 = scmp.ne.s32.totalorder %s117, %s131
    %p133 = scmp.eq.s32.totalorder %s23, 0
    %p134 = por %p132, %p133
    %s136 = sadd.s32 %s135, 1
    %p139 = scmp.eq.s32.totalorder %s17, 1
    %p140 = scmp.ne.s32.totalorder %s135, %s137
    %p141 = scmp.eq.s32.totalorder %s17, 0
    %p142 = por %p140, %p141
    %p143 = scmp.ne.s32.totalorder %s135, %s137
    %p144 = scmp.eq.s32.totalorder %s22, 1
    %p145 = por %p143, %p144
    %p146 = scmp.ne.s32.totalorder %s137, %s138
    %p147 = scmp.eq.s32.totalorder %s22, 0
    %p148 = por %p146, %p147
    %p149 = scmp.ne.s32.totalorder %s137, %s138
    %p150 = scmp.eq.s32.totalorder %s23, 1
    %p151 = por %p149, %p150
    %p153 = scmp.ne.s32.totalorder %s138, %s152
    %p154 = scmp.eq.s32.totalorder %s23, 0
    %p155 = por %p153, %p154
    %s157 = sadd.s32 %s156, 1
    %p160 = scmp.eq.s32.totalorder %s17, 1
    %p161 = scmp.ne.s32.totalorder %s156, %s158
    %p162 = scmp.eq.s32.totalorder %s17, 0
    %p163 = por %p161, %p162
    %p164 = scmp.ne.s32.totalorder %s156, %s158
    %p165 = scmp.eq.s32.totalorder %s22, 1
    %p166 = por %p164, %p165
    %p167 = scmp.ne.s32.totalorder %s158, %s159
    %p168 = scmp.eq.s32.totalorder %s22, 0
    %p169 = por %p167, %p168
    %p170 = scmp.ne.s32.totalorder %s158, %s159
    %p171 = scmp.eq.s32.totalorder %s23, 1
    %p172 = por %p170, %p171
    %p174 = scmp.ne.s32.totalorder %s159, %s173
    %p175 = scmp.eq.s32.totalorder %s23, 0
    %p176 = por %p174, %p175
    %s178 = sadd.s32 %s177, 1
    %p181 = scmp.eq.s32.totalorder %s17, 1
    %p182 = scmp.ne.s32.totalorder %s177, %s179
    %p183 = scmp.eq.s32.totalorder %s17, 0
    %p184 = por %p182, %p183
    %p185 = scmp.ne.s32.totalorder %s177, %s179
    %p186 = scmp.eq.s32.totalorder %s22, 1
    %p187 = por %p185, %p186
    %p188 = scmp.ne.s32.totalorder %s179, %s180
    %p189 = scmp.eq.s32.totalorder %s22, 0
    %p190 = por %p188, %p189
    %p191 = scmp.ne.s32.totalorder %s179, %s180
    %p192 = scmp.eq.s32.totalorder %s23, 1
    %p193 = por %p191, %p192
    %p195 = scmp.ne.s32.totalorder %s180, %s194
    %p196 = scmp.eq.s32.totalorder %s23, 0
    %p197 = por %p195, %p196
    %s199 = sadd.s32 %s198, 1
    %p202 = scmp.eq.s32.totalorder %s17, 1
    %p203 = scmp.ne.s32.totalorder %s198, %s200
    %p204 = scmp.eq.s32.totalorder %s17, 0
    %p205 = por %p203, %p204
    %p206 = scmp.ne.s32.totalorder %s198, %s200
    %p207 = scmp.eq.s32.totalorder %s22, 1
    %p208 = por %p206, %p207
    %p209 = scmp.ne.s32.totalorder %s200, %s201
    %p210 = scmp.eq.s32.totalorder %s22, 0
    %p211 = por %p209, %p210
    %p212 = scmp.ne.s32.totalorder %s200, %s201
    %p213 = scmp.eq.s32.totalorder %s23, 1
    %p214 = por %p212, %p213
    %p216 = scmp.ne.s32.totalorder %s201, %s215
    %p217 = scmp.eq.s32.totalorder %s23, 0
    %p218 = por %p216, %p217
    %s220 = sadd.s32 %s219, 1
    %p223 = scmp.eq.s32.totalorder %s17, 1
    %p224 = scmp.ne.s32.totalorder %s219, %s221
    %p225 = scmp.eq.s32.totalorder %s17, 0
    %p226 = por %p224, %p225
    %p227 = scmp.ne.s32.totalorder %s219, %s221
    %p228 = scmp.eq.s32.totalorder %s22, 1
    %p229 = por %p227, %p228
    %p230 = scmp.ne.s32.totalorder %s221, %s222
    %p231 = scmp.eq.s32.totalorder %s22, 0
    %p232 = por %p230, %p231
    %p233 = scmp.ne.s32.totalorder %s221, %s222
    %p234 = scmp.eq.s32.totalorder %s23, 1
    %p235 = por %p233, %p234
    %p237 = scmp.ne.s32.totalorder %s222, %s236
    %p238 = scmp.eq.s32.totalorder %s23, 0
    %p239 = por %p237, %p238
    %s241 = sadd.s32 %s240, 1
    %p244 = scmp.eq.s32.totalorder %s17, 1
    %p245 = scmp.ne.s32.totalorder %s240, %s242
    %p246 = scmp.eq.s32.totalorder %s17, 0
    %p247 = por %p245, %p246
    %p248 = scmp.ne.s32.totalorder %s240, %s242
    %p249 = scmp.eq.s32.totalorder %s22, 1
    %p250 = por %p248, %p249
    %p251 = scmp.ne.s32.totalorder %s242, %s243
    %p252 = scmp.eq.s32.totalorder %s22, 0
    %p253 = por %p251, %p252
    %p254 = scmp.ne.s32.totalorder %s242, %s243
    %p255 = scmp.eq.s32.totalorder %s23, 1
    %p256 = por %p254, %p255
    %p258 = scmp.ne.s32.totalorder %s243, %s257
    %p259 = scmp.eq.s32.totalorder %s23, 0
    %p260 = por %p258, %p259
    %s261 = ssub.s32 %s17, %s24
    %p262 = scmp.eq.s32.totalorder %s261, 0
    %s264 = sadd.s32 %s263, 1
    %s265 = scalar_select %p262, %s263, %s264
    %p268 = pneg %p262
    %p269 = scmp.eq.s32.totalorder %s17, 1
    %p270 = por %p268, %p269
    %p271 = scmp.ne.s32.totalorder %s263, %s266
    %p272 = scmp.eq.s32.totalorder %s17, 0
    %p273 = por %p271, %p272
    %p274 = scmp.ne.s32.totalorder %s263, %s266
    %p275 = scmp.eq.s32.totalorder %s22, 1
    %p276 = por %p274, %p275
    %p277 = scmp.ne.s32.totalorder %s266, %s267
    %p278 = scmp.eq.s32.totalorder %s22, 0
    %p279 = por %p277, %p278
    %p280 = scmp.ne.s32.totalorder %s266, %s267
    %p281 = scmp.eq.s32.totalorder %s23, 1
    %p282 = por %p280, %p281
    %p284 = scmp.ne.s32.totalorder %s267, %s283
    %p285 = scmp.eq.s32.totalorder %s23, 0
    %p286 = por %p284, %p285
    %p287 = scmp.le.s32.totalorder 1, %s17
    %p288 = scmp.lt.s32.totalorder %s17, 3
    %p289 = pnand %p287, %p288
    %p290 = pneg %p289
    // Predicated region
    $region9: #{tpu_custom_call.1} parent=5 // pred_check
      _
    $region10: #{tpu_custom_call.1} parent=5 // pred_check_branch
      %292 = sbr.rel (%p289) target = $region12
    $region11: #{tpu_custom_call.1} parent=5 // pred_region
      %s293 = ssub.s32 %s17, 1
      // Predicated region
      $region13: #{tpu_custom_call.1} parent=11 // pred_check
        %p294 = pneg %p64
      $region14: #{tpu_custom_call.1} parent=11 // pred_check_branch
        %296 = sbr.rel (%p294) target = $region16
      $region15: #{tpu_custom_call.1} parent=11 // pred_region
        _
      $region16: #{tpu_custom_call.1} parent=11 // pred_fallthru
        _
      // Predicated region
      $region17: #{tpu_custom_call.1} parent=11 // pred_check
        %p297 = pneg %p85
      $region18: #{tpu_custom_call.1} parent=11 // pred_check_branch
        %299 = sbr.rel (%p297) target = $region20
      $region19: #{tpu_custom_call.1} parent=11 // pred_region
        _
      $region20: #{tpu_custom_call.1} parent=11 // pred_fallthru
        _
      // Predicated region
      $region21: #{tpu_custom_call.1} parent=11 // pred_check
        %p300 = pneg %p106
      $region22: #{tpu_custom_call.1} parent=11 // pred_check_branch
        %302 = sbr.rel (%p300) target = $region24
      $region23: #{tpu_custom_call.1} parent=11 // pred_region
        _
      $region24: #{tpu_custom_call.1} parent=11 // pred_fallthru
        _
      // Predicated region
      $region25: #{tpu_custom_call.1} parent=11 // pred_check
        %p303 = pneg %p127
      $region26: #{tpu_custom_call.1} parent=11 // pred_check_branch
        %305 = sbr.rel (%p303) target = $region28
      $region27: #{tpu_custom_call.1} parent=11 // pred_region
        _
      $region28: #{tpu_custom_call.1} parent=11 // pred_fallthru
        _
      // Predicated region
      $region29: #{tpu_custom_call.1} parent=11 // pred_check
        %p306 = pneg %p148
      $region30: #{tpu_custom_call.1} parent=11 // pred_check_branch
        %308 = sbr.rel (%p306) target = $region32
      $region31: #{tpu_custom_call.1} parent=11 // pred_region
        _
      $region32: #{tpu_custom_call.1} parent=11 // pred_fallthru
        _
      // Predicated region
      $region33: #{tpu_custom_call.1} parent=11 // pred_check
        %p309 = pneg %p169
      $region34: #{tpu_custom_call.1} parent=11 // pred_check_branch
        %311 = sbr.rel (%p309) target = $region36
      $region35: #{tpu_custom_call.1} parent=11 // pred_region
        _
      $region36: #{tpu_custom_call.1} parent=11 // pred_fallthru
        _
      // Predicated region
      $region37: #{tpu_custom_call.1} parent=11 // pred_check
        %p312 = pneg %p190
      $region38: #{tpu_custom_call.1} parent=11 // pred_check_branch
        %314 = sbr.rel (%p312) target = $region40
      $region39: #{tpu_custom_call.1} parent=11 // pred_region
        _
      $region40: #{tpu_custom_call.1} parent=11 // pred_fallthru
        _
      // Predicated region
      $region41: #{tpu_custom_call.1} parent=11 // pred_check
        %p315 = pneg %p211
      $region42: #{tpu_custom_call.1} parent=11 // pred_check_branch
        %317 = sbr.rel (%p315) target = $region44
      $region43: #{tpu_custom_call.1} parent=11 // pred_region
        _
      $region44: #{tpu_custom_call.1} parent=11 // pred_fallthru
        _
      // Predicated region
      $region45: #{tpu_custom_call.1} parent=11 // pred_check
        %p318 = pneg %p232
      $region46: #{tpu_custom_call.1} parent=11 // pred_check_branch
        %320 = sbr.rel (%p318) target = $region48
      $region47: #{tpu_custom_call.1} parent=11 // pred_region
        _
      $region48: #{tpu_custom_call.1} parent=11 // pred_fallthru
        _
      // Predicated region
      $region49: #{tpu_custom_call.1} parent=11 // pred_check
        %p321 = pneg %p253
      $region50: #{tpu_custom_call.1} parent=11 // pred_check_branch
        %323 = sbr.rel (%p321) target = $region52
      $region51: #{tpu_custom_call.1} parent=11 // pred_region
        _
      $region52: #{tpu_custom_call.1} parent=11 // pred_fallthru
        _
    $region12: #{tpu_custom_call.1} parent=5 // pred_fallthru
      _
    %p324 = scmp.lt.s32.totalorder %s17, 2
    // Predicated region
    $region53: #{tpu_custom_call.1} parent=5 // pred_check
      %p325 = pneg %p324
    $region54: #{tpu_custom_call.1} parent=5 // pred_check_branch
      %327 = sbr.rel (%p325) target = $region56
    $region55: #{tpu_custom_call.1} parent=5 // pred_region
      // Predicated region
      $region57: #{tpu_custom_call.1} parent=55 // pred_check
        %p328 = pneg %p37
      $region58: #{tpu_custom_call.1} parent=55 // pred_check_branch
        %330 = sbr.rel (%p328) target = $region60
      $region59: #{tpu_custom_call.1} parent=55 // pred_region
        %p331 = scmp.lt.s32.totalorder %s17, 1
        %s332 = scalar_select %p331, %s17, 1
        %s333 = smul.addr %s332, 8
        %s334 = smul.addr %s333, 8
        %s335 = scalar_lea.vmem %s0, %s334
      $region60: #{tpu_custom_call.1} parent=55 // pred_fallthru
        _
    $region56: #{tpu_custom_call.1} parent=5 // pred_fallthru
      _
    %p336 = scmp.le.s32.totalorder 1, %s17
    %p337 = scmp.lt.s32.totalorder %s17, 3
    %p338 = pnand %p336, %p337
    %p339 = pneg %p338
    // Predicated region
    $region61: #{tpu_custom_call.1} parent=5 // pred_check
      _
    $region62: #{tpu_custom_call.1} parent=5 // pred_check_branch
      %341 = sbr.rel (%p338) target = $region64
    $region63: #{tpu_custom_call.1} parent=5 // pred_region
      %s342 = ssub.s32 %s17, 1
      %p343 = scmp.lt.s32.totalorder %s22, 1
      %s344 = scalar_select %p343, %s22, 1
      %s345 = smul.addr %s344, 8
      %s346 = smul.addr %s345, 8
      %s347 = scalar_lea.vmem %s0, %s346
      %p348 = pneg %p43
      %p349 = pneg %p40
      %p350 = pneg %p64
      %p351 = pneg %p61
      %p352 = pneg %p85
      %p353 = pneg %p82
      %p354 = pneg %p106
      %p355 = pneg %p103
      %p356 = pneg %p127
      %p357 = pneg %p124
      %p358 = pneg %p148
      %p359 = pneg %p145
      %p360 = pneg %p169
      %p361 = pneg %p166
      %p362 = pneg %p190
      %p363 = pneg %p187
      %p364 = pneg %p211
      %p365 = pneg %p208
      %p366 = pneg %p232
      %p367 = pneg %p229
      %p368 = pneg %p253
      %p369 = pneg %p250
      %p370 = pneg %p279
      %p371 = pneg %p276
      %p372 = scmp.lt.s32.totalorder %s22, 1
      %s373 = scalar_select %p372, %s22, 1
      %s374 = smul.addr %s373, 8
      %s375 = smul.addr %s374, 8
      %s376 = scalar_lea.vmem %s11, %s375
      %p377 = scmp.lt.s32.totalorder %s22, 1
      %s378 = scalar_select %p377, %s22, 1
      %s379 = smul.addr %s378, 8
      %s380 = smul.addr %s379, 8
      %s381 = scalar_lea.vmem %s0, %s380
      %p382 = scmp.lt.s32.totalorder %s22, 1
      %s383 = scalar_select %p382, %s22, 1
      %s384 = smul.addr %s383, 8
      %s385 = smul.addr %s384, 8
      %s386 = scalar_lea.vmem %s11, %s385
      %v388 = vld [vmem:[%s381] sm:$0xff]
      %v389 = vld [vmem:[%s381 + $0x8] sm:$0xff]
      %v390 = vld [vmem:[%s381 + $0x10] sm:$0xff]
      %v391 = vld [vmem:[%s381 + $0x18] sm:$0xff]
      %v392 = vld [vmem:[%s381 + $0x20] sm:$0xff]
      %v393 = vld [vmem:[%s381 + $0x28] sm:$0xff]
      %v394 = vld [vmem:[%s381 + $0x30] sm:$0xff]
      %v395 = vld [vmem:[%s381 + $0x38] sm:$0xff]
      %v396 = vld [vmem:[%s1] sm:$0x1]
      %v398 = vlaneseq
      %v399 = vshrl.u32 %v398, 7
      %v400 = vsub.s32 0, %v399
      %v401 = vrot.slane %v396, %v400
      %v403 = vmul.f32 %v388, %v401
      %v404 = vmul.f32 %v389, %v401
      %v405 = vmul.f32 %v390, %v401
      %v406 = vmul.f32 %v391, %v401
      %v407 = vmul.f32 %v392, %v401
      %v408 = vmul.f32 %v393, %v401
      %v409 = vmul.f32 %v394, %v401
      %v410 = vmul.f32 %v395, %v401
      %v411 = vld [vmem:[%s2] sm:$0x1]
      %v413 = vlaneseq
      %v414 = vshrl.u32 %v413, 7
      %v415 = vsub.s32 0, %v414
      %v416 = vrot.slane %v411, %v415
      %v418 = vadd.f32 %v403, %v416
      %v419 = vadd.f32 %v404, %v416
      %v420 = vadd.f32 %v405, %v416
      %v421 = vadd.f32 %v406, %v416
      %v422 = vadd.f32 %v407, %v416
      %v423 = vadd.f32 %v408, %v416
      %v424 = vadd.f32 %v409, %v416
      %v425 = vadd.f32 %v410, %v416
      %v426 = vmax.f32 %v418, 0.0
      %v427 = vmax.f32 %v419, 0.0
      %v428 = vmax.f32 %v420, 0.0
      %v429 = vmax.f32 %v421, 0.0
      %v430 = vmax.f32 %v422, 0.0
      %v431 = vmax.f32 %v423, 0.0
      %v432 = vmax.f32 %v424, 0.0
      %v433 = vmax.f32 %v425, 0.0
      %vm434 = vcmask 130048
      %435 = vst.msk [vmem:[#allocation2] sm:$0xff] %vm434, 0.0
      %vm436 = vcmask 123904
      %437 = vst.msk [vmem:[#allocation2 + $0x8] sm:$0x3] %vm436, 0.0
      %s438 = scalar_lea.vmem [#allocation2], 144
      %439 = vst.msk [vmem:[%s438] sm:$0xff] %vm434, 0.0
      %440 = vst.msk [vmem:[%s438 + $0x8] sm:$0x3] %vm436, 0.0
      %s441 = scalar_lea.vmem [#allocation2], 16
      %vm442 = vcmask 122880
      %443 = vst.msk [vmem:[%s441] sm:$0x1] %vm442, 0.0
      %444 = vst.msk [vmem:[%s441 + $0x10] sm:$0x1] %vm442, 0.0
      %445 = vst.msk [vmem:[%s441 + $0x20] sm:$0x1] %vm442, 0.0
      %446 = vst.msk [vmem:[%s441 + $0x30] sm:$0x1] %vm442, 0.0
      %447 = vst.msk [vmem:[%s441 + $0x40] sm:$0x1] %vm442, 0.0
      %448 = vst.msk [vmem:[%s441 + $0x50] sm:$0x1] %vm442, 0.0
      %449 = vst.msk [vmem:[%s441 + $0x60] sm:$0x1] %vm442, 0.0
      %450 = vst.msk [vmem:[%s441 + $0x70] sm:$0x1] %vm442, 0.0
      %451 = vst.msk [vmem:[%s441 + $0x9] sm:$0x1] %vm442, 0.0
      %452 = vst.msk [vmem:[%s441 + $0x19] sm:$0x1] %vm442, 0.0
      %453 = vst.msk [vmem:[%s441 + $0x29] sm:$0x1] %vm442, 0.0
      %454 = vst.msk [vmem:[%s441 + $0x39] sm:$0x1] %vm442, 0.0
      %455 = vst.msk [vmem:[%s441 + $0x49] sm:$0x1] %vm442, 0.0
      %456 = vst.msk [vmem:[%s441 + $0x59] sm:$0x1] %vm442, 0.0
      %457 = vst.msk [vmem:[%s441 + $0x69] sm:$0x1] %vm442, 0.0
      %458 = vst.msk [vmem:[%s441 + $0x79] sm:$0x1] %vm442, 0.0
      %459 = vst.msk [vmem:[%s441 + $0x1] sm:$0xff] %vm434, %v426
      %460 = vst.msk [vmem:[%s441 + $0x11] sm:$0xff] %vm434, %v427
      %461 = vst.msk [vmem:[%s441 + $0x21] sm:$0xff] %vm434, %v428
      %462 = vst.msk [vmem:[%s441 + $0x31] sm:$0xff] %vm434, %v429
      %463 = vst.msk [vmem:[%s441 + $0x41] sm:$0xff] %vm434, %v430
      %464 = vst.msk [vmem:[%s441 + $0x51] sm:$0xff] %vm434, %v431
      %465 = vst.msk [vmem:[%s441 + $0x61] sm:$0xff] %vm434, %v432
      %466 = vst.msk [vmem:[%s441 + $0x71] sm:$0xff] %vm434, %v433
      %v467 = vld [vmem:[#allocation2] sm:$0xff]
      %v468 = vld [vmem:[#allocation2 + $0x10] sm:$0xff]
      %v469 = vld [vmem:[#allocation2 + $0x20] sm:$0xff]
      %v470 = vld [vmem:[#allocation2 + $0x30] sm:$0xff]
      %v471 = vld [vmem:[#allocation2 + $0x40] sm:$0xff]
      %v472 = vld [vmem:[#allocation2 + $0x50] sm:$0xff]
      %v473 = vld [vmem:[#allocation2 + $0x60] sm:$0xff]
      %v474 = vld [vmem:[#allocation2 + $0x70] sm:$0xff]
      %475 = vst.msk [vmem:[#allocation4] sm:$0xff] %vm434, %v467
      %476 = vst.msk [vmem:[#allocation4 + $0x10] sm:$0xff] %vm434, %v468
      %477 = vst.msk [vmem:[#allocation4 + $0x20] sm:$0xff] %vm434, %v469
      %478 = vst.msk [vmem:[#allocation4 + $0x30] sm:$0xff] %vm434, %v470
      %479 = vst.msk [vmem:[#allocation4 + $0x40] sm:$0xff] %vm434, %v471
      %480 = vst.msk [vmem:[#allocation4 + $0x50] sm:$0xff] %vm434, %v472
      %481 = vst.msk [vmem:[#allocation4 + $0x60] sm:$0xff] %vm434, %v473
      %482 = vst.msk [vmem:[#allocation4 + $0x70] sm:$0xff] %vm434, %v474
      %v483 = vld [vmem:[#allocation2 + $0x1] sm:$0xff]
      %v484 = vld [vmem:[#allocation2 + $0x11] sm:$0xff]
      %v485 = vld [vmem:[#allocation2 + $0x21] sm:$0xff]
      %v486 = vld [vmem:[#allocation2 + $0x31] sm:$0xff]
      %v487 = vld [vmem:[#allocation2 + $0x41] sm:$0xff]
      %v488 = vld [vmem:[#allocation2 + $0x51] sm:$0xff]
      %v489 = vld [vmem:[#allocation2 + $0x61] sm:$0xff]
      %v490 = vld [vmem:[#allocation2 + $0x71] sm:$0xff]
      %499 = vrot.lane.b32.xlu0 %v483, 16
      %v500 = vpop.permute.xlu0 %499
      %501 = vrot.lane.b32.xlu0 %v484, 16
      %v502 = vpop.permute.xlu0 %501
      %503 = vrot.lane.b32.xlu0 %v485, 16
      %v504 = vpop.permute.xlu0 %503
      %505 = vrot.lane.b32.xlu0 %v486, 16
      %v506 = vpop.permute.xlu0 %505
      %507 = vrot.lane.b32.xlu0 %v487, 16
      %v508 = vpop.permute.xlu0 %507
      %509 = vrot.lane.b32.xlu0 %v488, 16
      %v510 = vpop.permute.xlu0 %509
      %511 = vrot.lane.b32.xlu0 %v489, 16
      %v512 = vpop.permute.xlu0 %511
      %513 = vrot.lane.b32.xlu0 %v490, 16
      %v514 = vpop.permute.xlu0 %513
      %vm523 = vcmask 261248
      %524 = vst.msk [vmem:[#allocation4] sm:$0xff] %vm523, %v500
      %525 = vst.msk [vmem:[#allocation4 + $0x10] sm:$0xff] %vm523, %v502
      %526 = vst.msk [vmem:[#allocation4 + $0x20] sm:$0xff] %vm523, %v504
      %527 = vst.msk [vmem:[#allocation4 + $0x30] sm:$0xff] %vm523, %v506
      %528 = vst.msk [vmem:[#allocation4 + $0x40] sm:$0xff] %vm523, %v508
      %529 = vst.msk [vmem:[#allocation4 + $0x50] sm:$0xff] %vm523, %v510
      %530 = vst.msk [vmem:[#allocation4 + $0x60] sm:$0xff] %vm523, %v512
      %531 = vst.msk [vmem:[#allocation4 + $0x70] sm:$0xff] %vm523, %v514
      %v532 = vld [vmem:[#allocation2 + $0x2] sm:$0xff]
      %v533 = vld [vmem:[#allocation2 + $0x12] sm:$0xff]
      %v534 = vld [vmem:[#allocation2 + $0x22] sm:$0xff]
      %v535 = vld [vmem:[#allocation2 + $0x32] sm:$0xff]
      %v536 = vld [vmem:[#allocation2 + $0x42] sm:$0xff]
      %v537 = vld [vmem:[#allocation2 + $0x52] sm:$0xff]
      %v538 = vld [vmem:[#allocation2 + $0x62] sm:$0xff]
      %v539 = vld [vmem:[#allocation2 + $0x72] sm:$0xff]
      %548 = vrot.lane.b32.xlu0 %v532, 32
      %v549 = vpop.permute.xlu0 %548
      %550 = vrot.lane.b32.xlu0 %v533, 32
      %v551 = vpop.permute.xlu0 %550
      %552 = vrot.lane.b32.xlu0 %v534, 32
      %v553 = vpop.permute.xlu0 %552
      %554 = vrot.lane.b32.xlu0 %v535, 32
      %v555 = vpop.permute.xlu0 %554
      %556 = vrot.lane.b32.xlu0 %v536, 32
      %v557 = vpop.permute.xlu0 %556
      %558 = vrot.lane.b32.xlu0 %v537, 32
      %v559 = vpop.permute.xlu0 %558
      %560 = vrot.lane.b32.xlu0 %v538, 32
      %v561 = vpop.permute.xlu0 %560
      %562 = vrot.lane.b32.xlu0 %v539, 32
      %v563 = vpop.permute.xlu0 %562
      %vm572 = vcmask 392448
      %573 = vst.msk [vmem:[#allocation4] sm:$0xff] %vm572, %v549
      %574 = vst.msk [vmem:[#allocation4 + $0x10] sm:$0xff] %vm572, %v551
      %575 = vst.msk [vmem:[#allocation4 + $0x20] sm:$0xff] %vm572, %v553
      %576 = vst.msk [vmem:[#allocation4 + $0x30] sm:$0xff] %vm572, %v555
      %577 = vst.msk [vmem:[#allocation4 + $0x40] sm:$0xff] %vm572, %v557
      %578 = vst.msk [vmem:[#allocation4 + $0x50] sm:$0xff] %vm572, %v559
      %579 = vst.msk [vmem:[#allocation4 + $0x60] sm:$0xff] %vm572, %v561
      %580 = vst.msk [vmem:[#allocation4 + $0x70] sm:$0xff] %vm572, %v563
      %v581 = vld [vmem:[%s441] sm:$0xff]
      %v582 = vld [vmem:[%s441 + $0x10] sm:$0xff]
      %v583 = vld [vmem:[%s441 + $0x20] sm:$0xff]
      %v584 = vld [vmem:[%s441 + $0x30] sm:$0xff]
      %v585 = vld [vmem:[%s441 + $0x40] sm:$0xff]
      %v586 = vld [vmem:[%s441 + $0x50] sm:$0xff]
      %v587 = vld [vmem:[%s441 + $0x60] sm:$0xff]
      %v588 = vld [vmem:[%s441 + $0x70] sm:$0xff]
      %597 = vrot.lane.b32.xlu0 %v581, 48
      %v598 = vpop.permute.xlu0 %597
      %599 = vrot.lane.b32.xlu0 %v582, 48
      %v600 = vpop.permute.xlu0 %599
      %601 = vrot.lane.b32.xlu0 %v583, 48
      %v602 = vpop.permute.xlu0 %601
      %603 = vrot.lane.b32.xlu0 %v584, 48
      %v604 = vpop.permute.xlu0 %603
      %605 = vrot.lane.b32.xlu0 %v585, 48
      %v606 = vpop.permute.xlu0 %605
      %607 = vrot.lane.b32.xlu0 %v586, 48
      %v608 = vpop.permute.xlu0 %607
      %609 = vrot.lane.b32.xlu0 %v587, 48
      %v610 = vpop.permute.xlu0 %609
      %611 = vrot.lane.b32.xlu0 %v588, 48
      %v612 = vpop.permute.xlu0 %611
      %vm621 = vcmask 523648
      %622 = vst.msk [vmem:[#allocation4] sm:$0xff] %vm621, %v598
      %623 = vst.msk [vmem:[#allocation4 + $0x10] sm:$0xff] %vm621, %v600
      %624 = vst.msk [vmem:[#allocation4 + $0x20] sm:$0xff] %vm621, %v602
      %625 = vst.msk [vmem:[#allocation4 + $0x30] sm:$0xff] %vm621, %v604
      %626 = vst.msk [vmem:[#allocation4 + $0x40] sm:$0xff] %vm621, %v606
      %627 = vst.msk [vmem:[#allocation4 + $0x50] sm:$0xff] %vm621, %v608
      %628 = vst.msk [vmem:[#allocation4 + $0x60] sm:$0xff] %vm621, %v610
      %629 = vst.msk [vmem:[#allocation4 + $0x70] sm:$0xff] %vm621, %v612
      %v630 = vld [vmem:[%s441 + $0x1] sm:$0xff]
      %v631 = vld [vmem:[%s441 + $0x11] sm:$0xff]
      %v632 = vld [vmem:[%s441 + $0x21] sm:$0xff]
      %v633 = vld [vmem:[%s441 + $0x31] sm:$0xff]
      %v634 = vld [vmem:[%s441 + $0x41] sm:$0xff]
      %v635 = vld [vmem:[%s441 + $0x51] sm:$0xff]
      %v636 = vld [vmem:[%s441 + $0x61] sm:$0xff]
      %v637 = vld [vmem:[%s441 + $0x71] sm:$0xff]
      %646 = vrot.lane.b32.xlu0 %v630, 64
      %v647 = vpop.permute.xlu0 %646
      %648 = vrot.lane.b32.xlu0 %v631, 64
      %v649 = vpop.permute.xlu0 %648
      %650 = vrot.lane.b32.xlu0 %v632, 64
      %v651 = vpop.permute.xlu0 %650
      %652 = vrot.lane.b32.xlu0 %v633, 64
      %v653 = vpop.permute.xlu0 %652
      %654 = vrot.lane.b32.xlu0 %v634, 64
      %v655 = vpop.permute.xlu0 %654
      %656 = vrot.lane.b32.xlu0 %v635, 64
      %v657 = vpop.permute.xlu0 %656
      %658 = vrot.lane.b32.xlu0 %v636, 64
      %v659 = vpop.permute.xlu0 %658
      %660 = vrot.lane.b32.xlu0 %v637, 64
      %v661 = vpop.permute.xlu0 %660
      %vm670 = vcmask 654848
      %671 = vst.msk [vmem:[#allocation4] sm:$0xff] %vm670, %v647
      %672 = vst.msk [vmem:[#allocation4 + $0x10] sm:$0xff] %vm670, %v649
      %673 = vst.msk [vmem:[#allocation4 + $0x20] sm:$0xff] %vm670, %v651
      %674 = vst.msk [vmem:[#allocation4 + $0x30] sm:$0xff] %vm670, %v653
      %675 = vst.msk [vmem:[#allocation4 + $0x40] sm:$0xff] %vm670, %v655
      %676 = vst.msk [vmem:[#allocation4 + $0x50] sm:$0xff] %vm670, %v657
      %677 = vst.msk [vmem:[#allocation4 + $0x60] sm:$0xff] %vm670, %v659
      %678 = vst.msk [vmem:[#allocation4 + $0x70] sm:$0xff] %vm670, %v661
      %v679 = vld [vmem:[%s441 + $0x2] sm:$0xff]
      %v680 = vld [vmem:[%s441 + $0x12] sm:$0xff]
      %v681 = vld [vmem:[%s441 + $0x22] sm:$0xff]
      %v682 = vld [vmem:[%s441 + $0x32] sm:$0xff]
      %v683 = vld [vmem:[%s441 + $0x42] sm:$0xff]
      %v684 = vld [vmem:[%s441 + $0x52] sm:$0xff]
      %v685 = vld [vmem:[%s441 + $0x62] sm:$0xff]
      %v686 = vld [vmem:[%s441 + $0x72] sm:$0xff]
      %695 = vrot.lane.b32.xlu0 %v679, 80
      %v696 = vpop.permute.xlu0 %695
      %697 = vrot.lane.b32.xlu0 %v680, 80
      %v698 = vpop.permute.xlu0 %697
      %699 = vrot.lane.b32.xlu0 %v681, 80
      %v700 = vpop.permute.xlu0 %699
      %701 = vrot.lane.b32.xlu0 %v682, 80
      %v702 = vpop.permute.xlu0 %701
      %703 = vrot.lane.b32.xlu0 %v683, 80
      %v704 = vpop.permute.xlu0 %703
      %705 = vrot.lane.b32.xlu0 %v684, 80
      %v706 = vpop.permute.xlu0 %705
      %707 = vrot.lane.b32.xlu0 %v685, 80
      %v708 = vpop.permute.xlu0 %707
      %709 = vrot.lane.b32.xlu0 %v686, 80
      %v710 = vpop.permute.xlu0 %709
      %vm719 = vcmask 786048
      %720 = vst.msk [vmem:[#allocation4] sm:$0xff] %vm719, %v696
      %721 = vst.msk [vmem:[#allocation4 + $0x10] sm:$0xff] %vm719, %v698
      %722 = vst.msk [vmem:[#allocation4 + $0x20] sm:$0xff] %vm719, %v700
      %723 = vst.msk [vmem:[#allocation4 + $0x30] sm:$0xff] %vm719, %v702
      %724 = vst.msk [vmem:[#allocation4 + $0x40] sm:$0xff] %vm719, %v704
      %725 = vst.msk [vmem:[#allocation4 + $0x50] sm:$0xff] %vm719, %v706
      %726 = vst.msk [vmem:[#allocation4 + $0x60] sm:$0xff] %vm719, %v708
      %727 = vst.msk [vmem:[#allocation4 + $0x70] sm:$0xff] %vm719, %v710
      %s728 = scalar_lea.vmem [#allocation2], 32
      %v729 = vld [vmem:[%s728] sm:$0xff]
      %v730 = vld [vmem:[%s728 + $0x10] sm:$0xff]
      %v731 = vld [vmem:[%s728 + $0x20] sm:$0xff]
      %v732 = vld [vmem:[%s728 + $0x30] sm:$0xff]
      %v733 = vld [vmem:[%s728 + $0x40] sm:$0xff]
      %v734 = vld [vmem:[%s728 + $0x50] sm:$0xff]
      %v735 = vld [vmem:[%s728 + $0x60] sm:$0xff]
      %v736 = vld [vmem:[%s728 + $0x70] sm:$0xff]
      %745 = vrot.lane.b32.xlu0 %v729, 96
      %v746 = vpop.permute.xlu0 %745
      %747 = vrot.lane.b32.xlu0 %v730, 96
      %v748 = vpop.permute.xlu0 %747
      %749 = vrot.lane.b32.xlu0 %v731, 96
      %v750 = vpop.permute.xlu0 %749
      %751 = vrot.lane.b32.xlu0 %v732, 96
      %v752 = vpop.permute.xlu0 %751
      %753 = vrot.lane.b32.xlu0 %v733, 96
      %v754 = vpop.permute.xlu0 %753
      %755 = vrot.lane.b32.xlu0 %v734, 96
      %v756 = vpop.permute.xlu0 %755
      %757 = vrot.lane.b32.xlu0 %v735, 96
      %v758 = vpop.permute.xlu0 %757
      %759 = vrot.lane.b32.xlu0 %v736, 96
      %v760 = vpop.permute.xlu0 %759
      %vm769 = vcmask 917248
      %770 = vst.msk [vmem:[#allocation4] sm:$0xff] %vm769, %v746
      %771 = vst.msk [vmem:[#allocation4 + $0x10] sm:$0xff] %vm769, %v748
      %772 = vst.msk [vmem:[#allocation4 + $0x20] sm:$0xff] %vm769, %v750
      %773 = vst.msk [vmem:[#allocation4 + $0x30] sm:$0xff] %vm769, %v752
      %774 = vst.msk [vmem:[#allocation4 + $0x40] sm:$0xff] %vm769, %v754
      %775 = vst.msk [vmem:[#allocation4 + $0x50] sm:$0xff] %vm769, %v756
      %776 = vst.msk [vmem:[#allocation4 + $0x60] sm:$0xff] %vm769, %v758
      %777 = vst.msk [vmem:[#allocation4 + $0x70] sm:$0xff] %vm769, %v760
      %v778 = vld [vmem:[%s728 + $0x1] sm:$0xff]
      %v779 = vld [vmem:[%s728 + $0x11] sm:$0xff]
      %v780 = vld [vmem:[%s728 + $0x21] sm:$0xff]
      %v781 = vld [vmem:[%s728 + $0x31] sm:$0xff]
      %v782 = vld [vmem:[%s728 + $0x41] sm:$0xff]
      %v783 = vld [vmem:[%s728 + $0x51] sm:$0xff]
      %v784 = vld [vmem:[%s728 + $0x61] sm:$0xff]
      %v785 = vld [vmem:[%s728 + $0x71] sm:$0xff]
      %794 = vrot.lane.b32.xlu0 %v778, 112
      %v795 = vpop.permute.xlu0 %794
      %796 = vrot.lane.b32.xlu0 %v779, 112
      %v797 = vpop.permute.xlu0 %796
      %798 = vrot.lane.b32.xlu0 %v780, 112
      %v799 = vpop.permute.xlu0 %798
      %800 = vrot.lane.b32.xlu0 %v781, 112
      %v801 = vpop.permute.xlu0 %800
      %802 = vrot.lane.b32.xlu0 %v782, 112
      %v803 = vpop.permute.xlu0 %802
      %804 = vrot.lane.b32.xlu0 %v783, 112
      %v805 = vpop.permute.xlu0 %804
      %806 = vrot.lane.b32.xlu0 %v784, 112
      %v807 = vpop.permute.xlu0 %806
      %808 = vrot.lane.b32.xlu0 %v785, 112
      %v809 = vpop.permute.xlu0 %808
      %vm818 = vcmask 1048448
      %819 = vst.msk [vmem:[#allocation4] sm:$0xff] %vm818, %v795
      %820 = vst.msk [vmem:[#allocation4 + $0x10] sm:$0xff] %vm818, %v797
      %821 = vst.msk [vmem:[#allocation4 + $0x20] sm:$0xff] %vm818, %v799
      %822 = vst.msk [vmem:[#allocation4 + $0x30] sm:$0xff] %vm818, %v801
      %823 = vst.msk [vmem:[#allocation4 + $0x40] sm:$0xff] %vm818, %v803
      %824 = vst.msk [vmem:[#allocation4 + $0x50] sm:$0xff] %vm818, %v805
      %825 = vst.msk [vmem:[#allocation4 + $0x60] sm:$0xff] %vm818, %v807
      %826 = vst.msk [vmem:[#allocation4 + $0x70] sm:$0xff] %vm818, %v809
      %v827 = vld [vmem:[%s728 + $0x2] sm:$0xff]
      %v828 = vld [vmem:[%s728 + $0x12] sm:$0xff]
      %v829 = vld [vmem:[%s728 + $0x22] sm:$0xff]
      %v830 = vld [vmem:[%s728 + $0x32] sm:$0xff]
      %v831 = vld [vmem:[%s728 + $0x42] sm:$0xff]
      %v832 = vld [vmem:[%s728 + $0x52] sm:$0xff]
      %v833 = vld [vmem:[%s728 + $0x62] sm:$0xff]
      %v834 = vld [vmem:[%s728 + $0x72] sm:$0xff]
      %835 = vst.msk [vmem:[#allocation4 + $0x8] sm:$0xff] %vm434, %v827
      %836 = vst.msk [vmem:[#allocation4 + $0x18] sm:$0xff] %vm434, %v828
      %837 = vst.msk [vmem:[#allocation4 + $0x28] sm:$0xff] %vm434, %v829
      %838 = vst.msk [vmem:[#allocation4 + $0x38] sm:$0xff] %vm434, %v830
      %839 = vst.msk [vmem:[#allocation4 + $0x48] sm:$0xff] %vm434, %v831
      %840 = vst.msk [vmem:[#allocation4 + $0x58] sm:$0xff] %vm434, %v832
      %841 = vst.msk [vmem:[#allocation4 + $0x68] sm:$0xff] %vm434, %v833
      %842 = vst.msk [vmem:[#allocation4 + $0x78] sm:$0xff] %vm434, %v834
      %v843 = vld [vmem:[#allocation4] sm:$0xff]
      %v844 = vld [vmem:[#allocation4 + $0x8] sm:$0xff]
      %v845 = vld [vmem:[#allocation4 + $0x10] sm:$0xff]
      %v846 = vld [vmem:[#allocation4 + $0x18] sm:$0xff]
      %v847 = vld [vmem:[#allocation4 + $0x20] sm:$0xff]
      %v848 = vld [vmem:[#allocation4 + $0x28] sm:$0xff]
      %v849 = vld [vmem:[#allocation4 + $0x30] sm:$0xff]
      %v850 = vld [vmem:[#allocation4 + $0x38] sm:$0xff]
      %v851 = vld [vmem:[#allocation4 + $0x40] sm:$0xff]
      %v852 = vld [vmem:[#allocation4 + $0x48] sm:$0xff]
      %v853 = vld [vmem:[#allocation4 + $0x50] sm:$0xff]
      %v854 = vld [vmem:[#allocation4 + $0x58] sm:$0xff]
      %v855 = vld [vmem:[#allocation4 + $0x60] sm:$0xff]
      %v856 = vld [vmem:[#allocation4 + $0x68] sm:$0xff]
      %v857 = vld [vmem:[#allocation4 + $0x70] sm:$0xff]
      %v858 = vld [vmem:[#allocation4 + $0x78] sm:$0xff]
      %v859 = vpack.c.bf16 %v845, %v843
      %v860 = vpack.c.bf16 %v846, %v844
      %v861 = vpack.c.bf16 %v849, %v847
      %v862 = vpack.c.bf16 %v850, %v848
      %v863 = vpack.c.bf16 %v853, %v851
      %v864 = vpack.c.bf16 %v854, %v852
      %v865 = vpack.c.bf16 %v857, %v855
      %v866 = vpack.c.bf16 %v858, %v856
      %v867 = vld [vmem:[%s5] sm:$0xf]
      %v868 = vld [vmem:[%s5 + $0x4] sm:$0xf]
      %v869 = vld [vmem:[%s5 + $0x8] sm:$0xf]
      %v870 = vld [vmem:[%s5 + $0xc] sm:$0xf]
      %v871 = vld [vmem:[%s5 + $0x10] sm:$0xf]
      %v872 = vld [vmem:[%s5 + $0x14] sm:$0xf]
      %v873 = vld [vmem:[%s5 + $0x18] sm:$0xf]
      %v874 = vld [vmem:[%s5 + $0x1c] sm:$0xf]
      %v875 = vld [vmem:[%s5 + $0x20] sm:$0xf]
      %v876 = vld [vmem:[%s5 + $0x24] sm:$0xf]
      %v877 = vld [vmem:[%s5 + $0x28] sm:$0xf]
      %v878 = vld [vmem:[%s5 + $0x2c] sm:$0xf]
      %v879 = vld [vmem:[%s5 + $0x30] sm:$0xf]
      %v880 = vld [vmem:[%s5 + $0x34] sm:$0xf]
      %v881 = vld [vmem:[%s5 + $0x38] sm:$0xf]
      %v882 = vld [vmem:[%s5 + $0x3c] sm:$0xf]
      %v883 = vld [vmem:[%s5 + $0x40] sm:$0xf]
      %v884 = vld [vmem:[%s5 + $0x44] sm:$0xf]
      %v903 = vunpack.c.l.b16 %v867
      %v904 = vunpack.c.l.b16 %v868
      %v905 = vunpack.c.l.b16 %v869
      %v906 = vunpack.c.l.b16 %v870
      %v907 = vunpack.c.l.b16 %v871
      %v908 = vunpack.c.l.b16 %v872
      %v909 = vunpack.c.l.b16 %v873
      %v910 = vunpack.c.l.b16 %v874
      %v911 = vunpack.c.l.b16 %v875
      %v912 = vunpack.c.l.b16 %v876
      %v913 = vunpack.c.l.b16 %v877
      %v914 = vunpack.c.l.b16 %v878
      %v915 = vunpack.c.l.b16 %v879
      %v916 = vunpack.c.l.b16 %v880
      %v917 = vunpack.c.l.b16 %v881
      %v918 = vunpack.c.l.b16 %v882
      %v919 = vunpack.c.l.b16 %v883
      %v920 = vunpack.c.l.b16 %v884
      %v921 = vpack.c.b16 %v904, %v903
      %v922 = vpack.c.b16 %v906, %v905
      %v923 = vpack.c.b16 %v908, %v907
      %v924 = vpack.c.b16 %v910, %v909
      %v925 = vpack.c.b16 %v912, %v911
      %v926 = vpack.c.b16 %v914, %v913
      %v927 = vpack.c.b16 %v916, %v915
      %v928 = vpack.c.b16 %v918, %v917
      %v929 = vpack.c.b16 %v920, %v919
      %v940 = vsel %vm434, %v860, 0
      %v943 = vsel %vm434, %v862, 0
      %v946 = vsel %vm434, %v864, 0
      %v949 = vsel %vm434, %v866, 0
      %951 = vmatprep.subr.bf16.mxu0 0
      %952 = vmatpush1.bf16.msra.mxu0 %v921
      %953 = vmatprep.subr.bf16.mxu0 0
      %954 = vmatpush1.bf16.msra.mxu0 %v922
      %955 = vmatprep.subr.bf16.mxu0 0
      %956 = vmatpush1.bf16.msra.mxu0 %v923
      %957 = vmatprep.subr.bf16.mxu0 0
      %958 = vmatpush1.bf16.msra.mxu0 %v924
      %959 = vmatprep.subr.bf16.mxu0 0
      %960 = vmatpush1.bf16.msra.mxu0 %v925
      %961 = vmatprep.subr.bf16.mxu0 0
      %962 = vmatpush1.bf16.msra.mxu0 %v926
      %963 = vmatprep.subr.bf16.mxu0 0
      %964 = vmatpush1.bf16.msra.mxu0 %v927
      %965 = vmatprep.subr.bf16.mxu0 0
      %966 = vmatpush1.bf16.msra.mxu0 %v928
      %967 = vmatprep.subr.bf16.mxu0 0
      %968 = vmatpush1.bf16.msra.mxu0 %v929
      %969 = vmatprep.subr.bf16.mxu0 0
      %970 = vmatpush1.bf16.msra.mxu0 0
      %971 = vmatprep.subr.bf16.mxu0 0
      %972 = vmatpush1.bf16.msra.mxu0 0
      %973 = vmatprep.subr.bf16.mxu0 0
      %974 = vmatpush1.bf16.msra.mxu0 0
      %975 = vmatprep.subr.bf16.mxu0 0
      %976 = vmatpush1.bf16.msra.mxu0 0
      %977 = vmatprep.subr.bf16.mxu0 0
      %978 = vmatpush1.bf16.msra.mxu0 0
      %979 = vmatprep.subr.bf16.mxu0 0
      %980 = vmatpush1.bf16.msra.mxu0 0
      %981 = vmatprep.subr.bf16.mxu0 0
      %982 = vmatpush1.bf16.msra.mxu0 0
      %983 = vmatprep.mubr.bf16.mxu0 %v940
      %984 = vmatmul.mubr.bf16.gmra.mrb[0].mxu0 %v859
      %v985 = vpop.f32.mrb[0].mxu0
      %v986 = vadd.f32 0.0, %v985
      %v987 = vpop.f32.mrb[0].mxu0
      %v988 = vpop.f32.mrb[0].mxu0
      %v989 = vadd.f32 0.0, %v988
      %v990 = vpop.f32.mrb[0].mxu0
      %991 = vmatprep.mubr.bf16.mxu0 %v943
      %992 = vmatmul.mubr.bf16.gmra.mrb[0].mxu0 %v861
      %v993 = vpop.f32.mrb[0].mxu0
      %v994 = vadd.f32 0.0, %v993
      %v995 = vpop.f32.mrb[0].mxu0
      %v996 = vpop.f32.mrb[0].mxu0
      %v997 = vadd.f32 0.0, %v996
      %v998 = vpop.f32.mrb[0].mxu0
      %999 = vmatprep.mubr.bf16.mxu0 %v946
      %1000 = vmatmul.mubr.bf16.gmra.mrb[0].mxu0 %v863
      %v1001 = vpop.f32.mrb[0].mxu0
      %v1002 = vadd.f32 0.0, %v1001
      %v1003 = vpop.f32.mrb[0].mxu0
      %v1004 = vpop.f32.mrb[0].mxu0
      %v1005 = vadd.f32 0.0, %v1004
      %v1006 = vpop.f32.mrb[0].mxu0
      %1007 = vmatprep.mubr.bf16.mxu0 %v949
      %1008 = vmatmul.mubr.bf16.gmra.mrb[0].mxu0 %v865
      %v1009 = vpop.f32.mrb[0].mxu0
      %v1010 = vadd.f32 0.0, %v1009
      %v1011 = vpop.f32.mrb[0].mxu0
      %v1012 = vpop.f32.mrb[0].mxu0
      %v1013 = vadd.f32 0.0, %v1012
      %v1014 = vpop.f32.mrb[0].mxu0
      %1015 = vdwg.mxu0
      %v1016 = vld [vmem:[%s3] sm:$0x1]
      %v1018 = vlaneseq
      %v1019 = vshrl.u32 %v1018, 7
      %v1020 = vsub.s32 0, %v1019
      %v1021 = vrot.slane %v1016, %v1020
      %v1023 = vmul.f32 %v986, %v1021
      %v1024 = vmul.f32 %v989, %v1021
      %v1025 = vmul.f32 %v994, %v1021
      %v1026 = vmul.f32 %v997, %v1021
      %v1027 = vmul.f32 %v1002, %v1021
      %v1028 = vmul.f32 %v1005, %v1021
      %v1029 = vmul.f32 %v1010, %v1021
      %v1030 = vmul.f32 %v1013, %v1021
      %v1031 = vld [vmem:[%s4] sm:$0x1]
      %v1033 = vlaneseq
      %v1034 = vshrl.u32 %v1033, 7
      %v1035 = vsub.s32 0, %v1034
      %v1036 = vrot.slane %v1031, %v1035
      %v1038 = vadd.f32 %v1023, %v1036
      %v1039 = vadd.f32 %v1024, %v1036
      %v1040 = vadd.f32 %v1025, %v1036
      %v1041 = vadd.f32 %v1026, %v1036
      %v1042 = vadd.f32 %v1027, %v1036
      %v1043 = vadd.f32 %v1028, %v1036
      %v1044 = vadd.f32 %v1029, %v1036
      %v1045 = vadd.f32 %v1030, %v1036
      %v1046 = vmax.f32 %v1038, 0.0
      %v1047 = vmax.f32 %v1039, 0.0
      %v1048 = vmax.f32 %v1040, 0.0
      %v1049 = vmax.f32 %v1041, 0.0
      %v1050 = vmax.f32 %v1042, 0.0
      %v1051 = vmax.f32 %v1043, 0.0
      %v1052 = vmax.f32 %v1044, 0.0
      %v1053 = vmax.f32 %v1045, 0.0
      %vm1054 = vcmask 261120
      %1055 = vst.msk [vmem:[#allocation3] sm:$0xff] %vm1054, 0.0
      %vm1056 = vcmask 254976
      %1057 = vst.msk [vmem:[#allocation3 + $0x8] sm:$0x3] %vm1056, 0.0
      %s1058 = scalar_lea.vmem [#allocation3], 144
      %1059 = vst.msk [vmem:[%s1058] sm:$0xff] %vm1054, 0.0
      %1060 = vst.msk [vmem:[%s1058 + $0x8] sm:$0x3] %vm1056, 0.0
      %s1061 = scalar_lea.vmem [#allocation3], 16
      %vm1062 = vcmask 253952
      %1063 = vst.msk [vmem:[%s1061] sm:$0x1] %vm1062, 0.0
      %1064 = vst.msk [vmem:[%s1061 + $0x10] sm:$0x1] %vm1062, 0.0
      %1065 = vst.msk [vmem:[%s1061 + $0x20] sm:$0x1] %vm1062, 0.0
      %1066 = vst.msk [vmem:[%s1061 + $0x30] sm:$0x1] %vm1062, 0.0
      %1067 = vst.msk [vmem:[%s1061 + $0x40] sm:$0x1] %vm1062, 0.0
      %1068 = vst.msk [vmem:[%s1061 + $0x50] sm:$0x1] %vm1062, 0.0
      %1069 = vst.msk [vmem:[%s1061 + $0x60] sm:$0x1] %vm1062, 0.0
      %1070 = vst.msk [vmem:[%s1061 + $0x70] sm:$0x1] %vm1062, 0.0
      %1071 = vst.msk [vmem:[%s1061 + $0x9] sm:$0x1] %vm1062, 0.0
      %1072 = vst.msk [vmem:[%s1061 + $0x19] sm:$0x1] %vm1062, 0.0
      %1073 = vst.msk [vmem:[%s1061 + $0x29] sm:$0x1] %vm1062, 0.0
      %1074 = vst.msk [vmem:[%s1061 + $0x39] sm:$0x1] %vm1062, 0.0
      %1075 = vst.msk [vmem:[%s1061 + $0x49] sm:$0x1] %vm1062, 0.0
      %1076 = vst.msk [vmem:[%s1061 + $0x59] sm:$0x1] %vm1062, 0.0
      %1077 = vst.msk [vmem:[%s1061 + $0x69] sm:$0x1] %vm1062, 0.0
      %1078 = vst.msk [vmem:[%s1061 + $0x79] sm:$0x1] %vm1062, 0.0
      %1079 = vst.msk [vmem:[%s1061 + $0x1] sm:$0xff] %vm1054, %v1046
      %1080 = vst.msk [vmem:[%s1061 + $0x11] sm:$0xff] %vm1054, %v1047
      %1081 = vst.msk [vmem:[%s1061 + $0x21] sm:$0xff] %vm1054, %v1048
      %1082 = vst.msk [vmem:[%s1061 + $0x31] sm:$0xff] %vm1054, %v1049
      %1083 = vst.msk [vmem:[%s1061 + $0x41] sm:$0xff] %vm1054, %v1050
      %1084 = vst.msk [vmem:[%s1061 + $0x51] sm:$0xff] %vm1054, %v1051
      %1085 = vst.msk [vmem:[%s1061 + $0x61] sm:$0xff] %vm1054, %v1052
      %1086 = vst.msk [vmem:[%s1061 + $0x71] sm:$0xff] %vm1054, %v1053
      %v1087 = vld [vmem:[#allocation3] sm:$0xff]
      %v1088 = vld [vmem:[#allocation3 + $0x10] sm:$0xff]
      %v1089 = vld [vmem:[#allocation3 + $0x20] sm:$0xff]
      %v1090 = vld [vmem:[#allocation3 + $0x30] sm:$0xff]
      %v1091 = vld [vmem:[#allocation3 + $0x40] sm:$0xff]
      %v1092 = vld [vmem:[#allocation3 + $0x50] sm:$0xff]
      %v1093 = vld [vmem:[#allocation3 + $0x60] sm:$0xff]
      %v1094 = vld [vmem:[#allocation3 + $0x70] sm:$0xff]
      %1095 = vst.msk [vmem:[#allocation5] sm:$0xff] %vm1054, %v1087
      %1096 = vst.msk [vmem:[#allocation5 + $0x18] sm:$0xff] %vm1054, %v1088
      %1097 = vst.msk [vmem:[#allocation5 + $0x30] sm:$0xff] %vm1054, %v1089
      %1098 = vst.msk [vmem:[#allocation5 + $0x48] sm:$0xff] %vm1054, %v1090
      %1099 = vst.msk [vmem:[#allocation5 + $0x60] sm:$0xff] %vm1054, %v1091
      %1100 = vst.msk [vmem:[#allocation5 + $0x78] sm:$0xff] %vm1054, %v1092
      %1101 = vst.msk [vmem:[#allocation5 + $0x90] sm:$0xff] %vm1054, %v1093
      %1102 = vst.msk [vmem:[#allocation5 + $0xa8] sm:$0xff] %vm1054, %v1094
      %v1103 = vld [vmem:[#allocation3 + $0x1] sm:$0xff]
      %v1104 = vld [vmem:[#allocation3 + $0x11] sm:$0xff]
      %v1105 = vld [vmem:[#allocation3 + $0x21] sm:$0xff]
      %v1106 = vld [vmem:[#allocation3 + $0x31] sm:$0xff]
      %v1107 = vld [vmem:[#allocation3 + $0x41] sm:$0xff]
      %v1108 = vld [vmem:[#allocation3 + $0x51] sm:$0xff]
      %v1109 = vld [vmem:[#allocation3 + $0x61] sm:$0xff]
      %v1110 = vld [vmem:[#allocation3 + $0x71] sm:$0xff]
      %1119 = vrot.lane.b32.xlu0 %v1103, 32
      %v1120 = vpop.permute.xlu0 %1119
      %1121 = vrot.lane.b32.xlu0 %v1104, 32
      %v1122 = vpop.permute.xlu0 %1121
      %1123 = vrot.lane.b32.xlu0 %v1105, 32
      %v1124 = vpop.permute.xlu0 %1123
      %1125 = vrot.lane.b32.xlu0 %v1106, 32
      %v1126 = vpop.permute.xlu0 %1125
      %1127 = vrot.lane.b32.xlu0 %v1107, 32
      %v1128 = vpop.permute.xlu0 %1127
      %1129 = vrot.lane.b32.xlu0 %v1108, 32
      %v1130 = vpop.permute.xlu0 %1129
      %1131 = vrot.lane.b32.xlu0 %v1109, 32
      %v1132 = vpop.permute.xlu0 %1131
      %1133 = vrot.lane.b32.xlu0 %v1110, 32
      %v1134 = vpop.permute.xlu0 %1133
      %vm1143 = vcmask 523520
      %1144 = vst.msk [vmem:[#allocation5] sm:$0xff] %vm1143, %v1120
      %1145 = vst.msk [vmem:[#allocation5 + $0x18] sm:$0xff] %vm1143, %v1122
      %1146 = vst.msk [vmem:[#allocation5 + $0x30] sm:$0xff] %vm1143, %v1124
      %1147 = vst.msk [vmem:[#allocation5 + $0x48] sm:$0xff] %vm1143, %v1126
      %1148 = vst.msk [vmem:[#allocation5 + $0x60] sm:$0xff] %vm1143, %v1128
      %1149 = vst.msk [vmem:[#allocation5 + $0x78] sm:$0xff] %vm1143, %v1130
      %1150 = vst.msk [vmem:[#allocation5 + $0x90] sm:$0xff] %vm1143, %v1132
      %1151 = vst.msk [vmem:[#allocation5 + $0xa8] sm:$0xff] %vm1143, %v1134
      %v1152 = vld [vmem:[#allocation3 + $0x2] sm:$0xff]
      %v1153 = vld [vmem:[#allocation3 + $0x12] sm:$0xff]
      %v1154 = vld [vmem:[#allocation3 + $0x22] sm:$0xff]
      %v1155 = vld [vmem:[#allocation3 + $0x32] sm:$0xff]
      %v1156 = vld [vmem:[#allocation3 + $0x42] sm:$0xff]
      %v1157 = vld [vmem:[#allocation3 + $0x52] sm:$0xff]
      %v1158 = vld [vmem:[#allocation3 + $0x62] sm:$0xff]
      %v1159 = vld [vmem:[#allocation3 + $0x72] sm:$0xff]
      %1168 = vrot.lane.b32.xlu0 %v1152, 64
      %v1169 = vpop.permute.xlu0 %1168
      %1170 = vrot.lane.b32.xlu0 %v1153, 64
      %v1171 = vpop.permute.xlu0 %1170
      %1172 = vrot.lane.b32.xlu0 %v1154, 64
      %v1173 = vpop.permute.xlu0 %1172
      %1174 = vrot.lane.b32.xlu0 %v1155, 64
      %v1175 = vpop.permute.xlu0 %1174
      %1176 = vrot.lane.b32.xlu0 %v1156, 64
      %v1177 = vpop.permute.xlu0 %1176
      %1178 = vrot.lane.b32.xlu0 %v1157, 64
      %v1179 = vpop.permute.xlu0 %1178
      %1180 = vrot.lane.b32.xlu0 %v1158, 64
      %v1181 = vpop.permute.xlu0 %1180
      %1182 = vrot.lane.b32.xlu0 %v1159, 64
      %v1183 = vpop.permute.xlu0 %1182
      %vm1192 = vcmask 785920
      %1193 = vst.msk [vmem:[#allocation5] sm:$0xff] %vm1192, %v1169
      %1194 = vst.msk [vmem:[#allocation5 + $0x18] sm:$0xff] %vm1192, %v1171
      %1195 = vst.msk [vmem:[#allocation5 + $0x30] sm:$0xff] %vm1192, %v1173
      %1196 = vst.msk [vmem:[#allocation5 + $0x48] sm:$0xff] %vm1192, %v1175
      %1197 = vst.msk [vmem:[#allocation5 + $0x60] sm:$0xff] %vm1192, %v1177
      %1198 = vst.msk [vmem:[#allocation5 + $0x78] sm:$0xff] %vm1192, %v1179
      %1199 = vst.msk [vmem:[#allocation5 + $0x90] sm:$0xff] %vm1192, %v1181
      %1200 = vst.msk [vmem:[#allocation5 + $0xa8] sm:$0xff] %vm1192, %v1183
      %v1201 = vld [vmem:[%s1061] sm:$0xff]
      %v1202 = vld [vmem:[%s1061 + $0x10] sm:$0xff]
      %v1203 = vld [vmem:[%s1061 + $0x20] sm:$0xff]
      %v1204 = vld [vmem:[%s1061 + $0x30] sm:$0xff]
      %v1205 = vld [vmem:[%s1061 + $0x40] sm:$0xff]
      %v1206 = vld [vmem:[%s1061 + $0x50] sm:$0xff]
      %v1207 = vld [vmem:[%s1061 + $0x60] sm:$0xff]
      %v1208 = vld [vmem:[%s1061 + $0x70] sm:$0xff]
      %1217 = vrot.lane.b32.xlu0 %v1201, 96
      %v1218 = vpop.permute.xlu0 %1217
      %1219 = vrot.lane.b32.xlu0 %v1202, 96
      %v1220 = vpop.permute.xlu0 %1219
      %1221 = vrot.lane.b32.xlu0 %v1203, 96
      %v1222 = vpop.permute.xlu0 %1221
      %1223 = vrot.lane.b32.xlu0 %v1204, 96
      %v1224 = vpop.permute.xlu0 %1223
      %1225 = vrot.lane.b32.xlu0 %v1205, 96
      %v1226 = vpop.permute.xlu0 %1225
      %1227 = vrot.lane.b32.xlu0 %v1206, 96
      %v1228 = vpop.permute.xlu0 %1227
      %1229 = vrot.lane.b32.xlu0 %v1207, 96
      %v1230 = vpop.permute.xlu0 %1229
      %1231 = vrot.lane.b32.xlu0 %v1208, 96
      %v1232 = vpop.permute.xlu0 %1231
      %vm1241 = vcmask 1048320
      %1242 = vst.msk [vmem:[#allocation5] sm:$0xff] %vm1241, %v1218
      %1243 = vst.msk [vmem:[#allocation5 + $0x18] sm:$0xff] %vm1241, %v1220
      %1244 = vst.msk [vmem:[#allocation5 + $0x30] sm:$0xff] %vm1241, %v1222
      %1245 = vst.msk [vmem:[#allocation5 + $0x48] sm:$0xff] %vm1241, %v1224
      %1246 = vst.msk [vmem:[#allocation5 + $0x60] sm:$0xff] %vm1241, %v1226
      %1247 = vst.msk [vmem:[#allocation5 + $0x78] sm:$0xff] %vm1241, %v1228
      %1248 = vst.msk [vmem:[#allocation5 + $0x90] sm:$0xff] %vm1241, %v1230
      %1249 = vst.msk [vmem:[#allocation5 + $0xa8] sm:$0xff] %vm1241, %v1232
      %v1250 = vld [vmem:[%s1061 + $0x1] sm:$0xff]
      %v1251 = vld [vmem:[%s1061 + $0x11] sm:$0xff]
      %v1252 = vld [vmem:[%s1061 + $0x21] sm:$0xff]
      %v1253 = vld [vmem:[%s1061 + $0x31] sm:$0xff]
      %v1254 = vld [vmem:[%s1061 + $0x41] sm:$0xff]
      %v1255 = vld [vmem:[%s1061 + $0x51] sm:$0xff]
      %v1256 = vld [vmem:[%s1061 + $0x61] sm:$0xff]
      %v1257 = vld [vmem:[%s1061 + $0x71] sm:$0xff]
      %1258 = vst.msk [vmem:[#allocation5 + $0x8] sm:$0xff] %vm1054, %v1250
      %1259 = vst.msk [vmem:[#allocation5 + $0x20] sm:$0xff] %vm1054, %v1251
      %1260 = vst.msk [vmem:[#allocation5 + $0x38] sm:$0xff] %vm1054, %v1252
      %1261 = vst.msk [vmem:[#allocation5 + $0x50] sm:$0xff] %vm1054, %v1253
      %1262 = vst.msk [vmem:[#allocation5 + $0x68] sm:$0xff] %vm1054, %v1254
      %1263 = vst.msk [vmem:[#allocation5 + $0x80] sm:$0xff] %vm1054, %v1255
      %1264 = vst.msk [vmem:[#allocation5 + $0x98] sm:$0xff] %vm1054, %v1256
      %1265 = vst.msk [vmem:[#allocation5 + $0xb0] sm:$0xff] %vm1054, %v1257
      %v1266 = vld [vmem:[%s1061 + $0x2] sm:$0xff]
      %v1267 = vld [vmem:[%s1061 + $0x12] sm:$0xff]
      %v1268 = vld [vmem:[%s1061 + $0x22] sm:$0xff]
      %v1269 = vld [vmem:[%s1061 + $0x32] sm:$0xff]
      %v1270 = vld [vmem:[%s1061 + $0x42] sm:$0xff]
      %v1271 = vld [vmem:[%s1061 + $0x52] sm:$0xff]
      %v1272 = vld [vmem:[%s1061 + $0x62] sm:$0xff]
      %v1273 = vld [vmem:[%s1061 + $0x72] sm:$0xff]
      %1282 = vrot.lane.b32.xlu0 %v1266, 32
      %v1283 = vpop.permute.xlu0 %1282
      %1284 = vrot.lane.b32.xlu0 %v1267, 32
      %v1285 = vpop.permute.xlu0 %1284
      %1286 = vrot.lane.b32.xlu0 %v1268, 32
      %v1287 = vpop.permute.xlu0 %1286
      %1288 = vrot.lane.b32.xlu0 %v1269, 32
      %v1289 = vpop.permute.xlu0 %1288
      %1290 = vrot.lane.b32.xlu0 %v1270, 32
      %v1291 = vpop.permute.xlu0 %1290
      %1292 = vrot.lane.b32.xlu0 %v1271, 32
      %v1293 = vpop.permute.xlu0 %1292
      %1294 = vrot.lane.b32.xlu0 %v1272, 32
      %v1295 = vpop.permute.xlu0 %1294
      %1296 = vrot.lane.b32.xlu0 %v1273, 32
      %v1297 = vpop.permute.xlu0 %1296
      %1306 = vst.msk [vmem:[#allocation5 + $0x8] sm:$0xff] %vm1143, %v1283
      %1307 = vst.msk [vmem:[#allocation5 + $0x20] sm:$0xff] %vm1143, %v1285
      %1308 = vst.msk [vmem:[#allocation5 + $0x38] sm:$0xff] %vm1143, %v1287
      %1309 = vst.msk [vmem:[#allocation5 + $0x50] sm:$0xff] %vm1143, %v1289
      %1310 = vst.msk [vmem:[#allocation5 + $0x68] sm:$0xff] %vm1143, %v1291
      %1311 = vst.msk [vmem:[#allocation5 + $0x80] sm:$0xff] %vm1143, %v1293
      %1312 = vst.msk [vmem:[#allocation5 + $0x98] sm:$0xff] %vm1143, %v1295
      %1313 = vst.msk [vmem:[#allocation5 + $0xb0] sm:$0xff] %vm1143, %v1297
      %s1314 = scalar_lea.vmem [#allocation3], 32
      %v1315 = vld [vmem:[%s1314] sm:$0xff]
      %v1316 = vld [vmem:[%s1314 + $0x10] sm:$0xff]
      %v1317 = vld [vmem:[%s1314 + $0x20] sm:$0xff]
      %v1318 = vld [vmem:[%s1314 + $0x30] sm:$0xff]
      %v1319 = vld [vmem:[%s1314 + $0x40] sm:$0xff]
      %v1320 = vld [vmem:[%s1314 + $0x50] sm:$0xff]
      %v1321 = vld [vmem:[%s1314 + $0x60] sm:$0xff]
      %v1322 = vld [vmem:[%s1314 + $0x70] sm:$0xff]
      %1331 = vrot.lane.b32.xlu0 %v1315, 64
      %v1332 = vpop.permute.xlu0 %1331
      %1333 = vrot.lane.b32.xlu0 %v1316, 64
      %v1334 = vpop.permute.xlu0 %1333
      %1335 = vrot.lane.b32.xlu0 %v1317, 64
      %v1336 = vpop.permute.xlu0 %1335
      %1337 = vrot.lane.b32.xlu0 %v1318, 64
      %v1338 = vpop.permute.xlu0 %1337
      %1339 = vrot.lane.b32.xlu0 %v1319, 64
      %v1340 = vpop.permute.xlu0 %1339
      %1341 = vrot.lane.b32.xlu0 %v1320, 64
      %v1342 = vpop.permute.xlu0 %1341
      %1343 = vrot.lane.b32.xlu0 %v1321, 64
      %v1344 = vpop.permute.xlu0 %1343
      %1345 = vrot.lane.b32.xlu0 %v1322, 64
      %v1346 = vpop.permute.xlu0 %1345
      %1355 = vst.msk [vmem:[#allocation5 + $0x8] sm:$0xff] %vm1192, %v1332
      %1356 = vst.msk [vmem:[#allocation5 + $0x20] sm:$0xff] %vm1192, %v1334
      %1357 = vst.msk [vmem:[#allocation5 + $0x38] sm:$0xff] %vm1192, %v1336
      %1358 = vst.msk [vmem:[#allocation5 + $0x50] sm:$0xff] %vm1192, %v1338
      %1359 = vst.msk [vmem:[#allocation5 + $0x68] sm:$0xff] %vm1192, %v1340
      %1360 = vst.msk [vmem:[#allocation5 + $0x80] sm:$0xff] %vm1192, %v1342
      %1361 = vst.msk [vmem:[#allocation5 + $0x98] sm:$0xff] %vm1192, %v1344
      %1362 = vst.msk [vmem:[#allocation5 + $0xb0] sm:$0xff] %vm1192, %v1346
      %v1363 = vld [vmem:[%s1314 + $0x1] sm:$0xff]
      %v1364 = vld [vmem:[%s1314 + $0x11] sm:$0xff]
      %v1365 = vld [vmem:[%s1314 + $0x21] sm:$0xff]
      %v1366 = vld [vmem:[%s1314 + $0x31] sm:$0xff]
      %v1367 = vld [vmem:[%s1314 + $0x41] sm:$0xff]
      %v1368 = vld [vmem:[%s1314 + $0x51] sm:$0xff]
      %v1369 = vld [vmem:[%s1314 + $0x61] sm:$0xff]
      %v1370 = vld [vmem:[%s1314 + $0x71] sm:$0xff]
      %1379 = vrot.lane.b32.xlu0 %v1363, 96
      %v1380 = vpop.permute.xlu0 %1379
      %1381 = vrot.lane.b32.xlu0 %v1364, 96
      %v1382 = vpop.permute.xlu0 %1381
      %1383 = vrot.lane.b32.xlu0 %v1365, 96
      %v1384 = vpop.permute.xlu0 %1383
      %1385 = vrot.lane.b32.xlu0 %v1366, 96
      %v1386 = vpop.permute.xlu0 %1385
      %1387 = vrot.lane.b32.xlu0 %v1367, 96
      %v1388 = vpop.permute.xlu0 %1387
      %1389 = vrot.lane.b32.xlu0 %v1368, 96
      %v1390 = vpop.permute.xlu0 %1389
      %1391 = vrot.lane.b32.xlu0 %v1369, 96
      %v1392 = vpop.permute.xlu0 %1391
      %1393 = vrot.lane.b32.xlu0 %v1370, 96
      %v1394 = vpop.permute.xlu0 %1393
      %1403 = vst.msk [vmem:[#allocation5 + $0x8] sm:$0xff] %vm1241, %v1380
      %1404 = vst.msk [vmem:[#allocation5 + $0x20] sm:$0xff] %vm1241, %v1382
      %1405 = vst.msk [vmem:[#allocation5 + $0x38] sm:$0xff] %vm1241, %v1384
      %1406 = vst.msk [vmem:[#allocation5 + $0x50] sm:$0xff] %vm1241, %v1386
      %1407 = vst.msk [vmem:[#allocation5 + $0x68] sm:$0xff] %vm1241, %v1388
      %1408 = vst.msk [vmem:[#allocation5 + $0x80] sm:$0xff] %vm1241, %v1390
      %1409 = vst.msk [vmem:[#allocation5 + $0x98] sm:$0xff] %vm1241, %v1392
      %1410 = vst.msk [vmem:[#allocation5 + $0xb0] sm:$0xff] %vm1241, %v1394
      %v1411 = vld [vmem:[%s1314 + $0x2] sm:$0xff]
      %v1412 = vld [vmem:[%s1314 + $0x12] sm:$0xff]
      %v1413 = vld [vmem:[%s1314 + $0x22] sm:$0xff]
      %v1414 = vld [vmem:[%s1314 + $0x32] sm:$0xff]
      %v1415 = vld [vmem:[%s1314 + $0x42] sm:$0xff]
      %v1416 = vld [vmem:[%s1314 + $0x52] sm:$0xff]
      %v1417 = vld [vmem:[%s1314 + $0x62] sm:$0xff]
      %v1418 = vld [vmem:[%s1314 + $0x72] sm:$0xff]
      %1419 = vst.msk [vmem:[#allocation5 + $0x10] sm:$0xff] %vm1054, %v1411
      %1420 = vst.msk [vmem:[#allocation5 + $0x28] sm:$0xff] %vm1054, %v1412
      %1421 = vst.msk [vmem:[#allocation5 + $0x40] sm:$0xff] %vm1054, %v1413
      %1422 = vst.msk [vmem:[#allocation5 + $0x58] sm:$0xff] %vm1054, %v1414
      %1423 = vst.msk [vmem:[#allocation5 + $0x70] sm:$0xff] %vm1054, %v1415
      %1424 = vst.msk [vmem:[#allocation5 + $0x88] sm:$0xff] %vm1054, %v1416
      %1425 = vst.msk [vmem:[#allocation5 + $0xa0] sm:$0xff] %vm1054, %v1417
      %1426 = vst.msk [vmem:[#allocation5 + $0xb8] sm:$0xff] %vm1054, %v1418
      %v1427 = vld [vmem:[#allocation5] sm:$0xff]
      %v1428 = vld [vmem:[#allocation5 + $0x8] sm:$0xff]
      %v1429 = vld [vmem:[#allocation5 + $0x10] sm:$0xff]
      %v1430 = vld [vmem:[#allocation5 + $0x18] sm:$0xff]
      %v1431 = vld [vmem:[#allocation5 + $0x20] sm:$0xff]
      %v1432 = vld [vmem:[#allocation5 + $0x28] sm:$0xff]
      %v1433 = vld [vmem:[#allocation5 + $0x30] sm:$0xff]
      %v1434 = vld [vmem:[#allocation5 + $0x38] sm:$0xff]
      %v1435 = vld [vmem:[#allocation5 + $0x40] sm:$0xff]
      %v1436 = vld [vmem:[#allocation5 + $0x48] sm:$0xff]
      %v1437 = vld [vmem:[#allocation5 + $0x50] sm:$0xff]
      %v1438 = vld [vmem:[#allocation5 + $0x58] sm:$0xff]
      %v1439 = vld [vmem:[#allocation5 + $0x60] sm:$0xff]
      %v1440 = vld [vmem:[#allocation5 + $0x68] sm:$0xff]
      %v1441 = vld [vmem:[#allocation5 + $0x70] sm:$0xff]
      %v1442 = vld [vmem:[#allocation5 + $0x78] sm:$0xff]
      %v1443 = vld [vmem:[#allocation5 + $0x80] sm:$0xff]
      %v1444 = vld [vmem:[#allocation5 + $0x88] sm:$0xff]
      %v1445 = vld [vmem:[#allocation5 + $0x90] sm:$0xff]
      %v1446 = vld [vmem:[#allocation5 + $0x98] sm:$0xff]
      %v1447 = vld [vmem:[#allocation5 + $0xa0] sm:$0xff]
      %v1448 = vld [vmem:[#allocation5 + $0xa8] sm:$0xff]
      %v1449 = vld [vmem:[#allocation5 + $0xb0] sm:$0xff]
      %v1450 = vld [vmem:[#allocation5 + $0xb8] sm:$0xff]
      %v1451 = vpack.c.bf16 %v1430, %v1427
      %v1452 = vpack.c.bf16 %v1431, %v1428
      %v1453 = vpack.c.bf16 %v1432, %v1429
      %v1454 = vpack.c.bf16 %v1436, %v1433
      %v1455 = vpack.c.bf16 %v1437, %v1434
      %v1456 = vpack.c.bf16 %v1438, %v1435
      %v1457 = vpack.c.bf16 %v1442, %v1439
      %v1458 = vpack.c.bf16 %v1443, %v1440
      %v1459 = vpack.c.bf16 %v1444, %v1441
      %v1460 = vpack.c.bf16 %v1448, %v1445
      %v1461 = vpack.c.bf16 %v1449, %v1446
      %v1462 = vpack.c.bf16 %v1450, %v1447
      %v1463 = vld [vmem:[%s6] sm:$0xf]
      %v1464 = vld [vmem:[%s6 + $0x4] sm:$0xf]
      %v1465 = vld [vmem:[%s6 + $0x8] sm:$0xf]
      %v1466 = vld [vmem:[%s6 + $0xc] sm:$0xf]
      %v1467 = vld [vmem:[%s6 + $0x10] sm:$0xf]
      %v1468 = vld [vmem:[%s6 + $0x14] sm:$0xf]
      %v1469 = vld [vmem:[%s6 + $0x18] sm:$0xf]
      %v1470 = vld [vmem:[%s6 + $0x1c] sm:$0xf]
      %v1471 = vld [vmem:[%s6 + $0x20] sm:$0xf]
      %v1472 = vld [vmem:[%s6 + $0x24] sm:$0xf]
      %v1473 = vld [vmem:[%s6 + $0x28] sm:$0xf]
      %v1474 = vld [vmem:[%s6 + $0x2c] sm:$0xf]
      %v1475 = vld [vmem:[%s6 + $0x30] sm:$0xf]
      %v1476 = vld [vmem:[%s6 + $0x34] sm:$0xf]
      %v1477 = vld [vmem:[%s6 + $0x38] sm:$0xf]
      %v1478 = vld [vmem:[%s6 + $0x3c] sm:$0xf]
      %v1479 = vld [vmem:[%s6 + $0x40] sm:$0xf]
      %v1480 = vld [vmem:[%s6 + $0x44] sm:$0xf]
      %v1481 = vld [vmem:[%s6 + $0x48] sm:$0xf]
      %v1482 = vld [vmem:[%s6 + $0x4c] sm:$0xf]
      %v1483 = vld [vmem:[%s6 + $0x50] sm:$0xf]
      %v1484 = vld [vmem:[%s6 + $0x54] sm:$0xf]
      %v1485 = vld [vmem:[%s6 + $0x58] sm:$0xf]
      %v1486 = vld [vmem:[%s6 + $0x5c] sm:$0xf]
      %v1487 = vld [vmem:[%s6 + $0x60] sm:$0xf]
      %v1488 = vld [vmem:[%s6 + $0x64] sm:$0xf]
      %v1489 = vld [vmem:[%s6 + $0x68] sm:$0xf]
      %v1490 = vld [vmem:[%s6 + $0x6c] sm:$0xf]
      %v1491 = vld [vmem:[%s6 + $0x70] sm:$0xf]
      %v1492 = vld [vmem:[%s6 + $0x74] sm:$0xf]
      %v1493 = vld [vmem:[%s6 + $0x78] sm:$0xf]
      %v1494 = vld [vmem:[%s6 + $0x7c] sm:$0xf]
      %v1495 = vld [vmem:[%s6 + $0x80] sm:$0xf]
      %v1496 = vld [vmem:[%s6 + $0x84] sm:$0xf]
      %v1497 = vld [vmem:[%s6 + $0x88] sm:$0xf]
      %v1498 = vld [vmem:[%s6 + $0x8c] sm:$0xf]
      %v1535 = vunpack.c.l.b16 %v1463
      %v1536 = vunpack.c.l.b16 %v1464
      %v1537 = vunpack.c.l.b16 %v1465
      %v1538 = vunpack.c.l.b16 %v1466
      %v1539 = vunpack.c.l.b16 %v1467
      %v1540 = vunpack.c.l.b16 %v1468
      %v1541 = vunpack.c.l.b16 %v1469
      %v1542 = vunpack.c.l.b16 %v1470
      %v1543 = vunpack.c.l.b16 %v1471
      %v1544 = vunpack.c.l.b16 %v1472
      %v1545 = vunpack.c.l.b16 %v1473
      %v1546 = vunpack.c.l.b16 %v1474
      %v1547 = vunpack.c.l.b16 %v1475
      %v1548 = vunpack.c.l.b16 %v1476
      %v1549 = vunpack.c.l.b16 %v1477
      %v1550 = vunpack.c.l.b16 %v1478
      %v1551 = vunpack.c.l.b16 %v1479
      %v1552 = vunpack.c.l.b16 %v1480
      %v1553 = vunpack.c.l.b16 %v1481
      %v1554 = vunpack.c.l.b16 %v1482
      %v1555 = vunpack.c.l.b16 %v1483
      %v1556 = vunpack.c.l.b16 %v1484
      %v1557 = vunpack.c.l.b16 %v1485
      %v1558 = vunpack.c.l.b16 %v1486
      %v1559 = vunpack.c.l.b16 %v1487
      %v1560 = vunpack.c.l.b16 %v1488
      %v1561 = vunpack.c.l.b16 %v1489
      %v1562 = vunpack.c.l.b16 %v1490
      %v1563 = vunpack.c.l.b16 %v1491
      %v1564 = vunpack.c.l.b16 %v1492
      %v1565 = vunpack.c.l.b16 %v1493
      %v1566 = vunpack.c.l.b16 %v1494
      %v1567 = vunpack.c.l.b16 %v1495
      %v1568 = vunpack.c.l.b16 %v1496
      %v1569 = vunpack.c.l.b16 %v1497
      %v1570 = vunpack.c.l.b16 %v1498
      %v1571 = vpack.c.b16 %v1536, %v1535
      %v1572 = vpack.c.b16 %v1538, %v1537
      %v1573 = vpack.c.b16 %v1540, %v1539
      %v1574 = vpack.c.b16 %v1542, %v1541
      %v1575 = vpack.c.b16 %v1544, %v1543
      %v1576 = vpack.c.b16 %v1546, %v1545
      %v1577 = vpack.c.b16 %v1548, %v1547
      %v1578 = vpack.c.b16 %v1550, %v1549
      %v1579 = vpack.c.b16 %v1552, %v1551
      %v1580 = vpack.c.b16 %v1554, %v1553
      %v1581 = vpack.c.b16 %v1556, %v1555
      %v1582 = vpack.c.b16 %v1558, %v1557
      %v1583 = vpack.c.b16 %v1560, %v1559
      %v1584 = vpack.c.b16 %v1562, %v1561
      %v1585 = vpack.c.b16 %v1564, %v1563
      %v1586 = vpack.c.b16 %v1566, %v1565
      %v1587 = vpack.c.b16 %v1568, %v1567
      %v1588 = vpack.c.b16 %v1570, %v1569
      %v1608 = vsel %vm1054, %v1453, 0
      %v1611 = vsel %vm1054, %v1456, 0
      %v1614 = vsel %vm1054, %v1459, 0
      %v1617 = vsel %vm1054, %v1462, 0
      %1619 = vmatprep.subr.bf16.mxu0 0
      %1620 = vmatpush1.bf16.msra.mxu0 %v1571
      %1621 = vmatprep.subr.bf16.mxu0 0
      %1622 = vmatpush1.bf16.msra.mxu0 %v1572
      %1623 = vmatprep.subr.bf16.mxu0 0
      %1624 = vmatpush1.bf16.msra.mxu0 %v1573
      %1625 = vmatprep.subr.bf16.mxu0 0
      %1626 = vmatpush1.bf16.msra.mxu0 %v1574
      %1627 = vmatprep.subr.bf16.mxu0 0
      %1628 = vmatpush1.bf16.msra.mxu0 %v1575
      %1629 = vmatprep.subr.bf16.mxu0 0
      %1630 = vmatpush1.bf16.msra.mxu0 %v1576
      %1631 = vmatprep.subr.bf16.mxu0 0
      %1632 = vmatpush1.bf16.msra.mxu0 %v1577
      %1633 = vmatprep.subr.bf16.mxu0 0
      %1634 = vmatpush1.bf16.msra.mxu0 %v1578
      %1635 = vmatprep.subr.bf16.mxu0 0
      %1636 = vmatpush1.bf16.msra.mxu0 %v1579
      %1637 = vmatprep.subr.bf16.mxu0 0
      %1638 = vmatpush1.bf16.msra.mxu0 %v1580
      %1639 = vmatprep.subr.bf16.mxu0 0
      %1640 = vmatpush1.bf16.msra.mxu0 %v1581
      %1641 = vmatprep.subr.bf16.mxu0 0
      %1642 = vmatpush1.bf16.msra.mxu0 %v1582
      %1643 = vmatprep.subr.bf16.mxu0 0
      %1644 = vmatpush1.bf16.msra.mxu0 %v1583
      %1645 = vmatprep.subr.bf16.mxu0 0
      %1646 = vmatpush1.bf16.msra.mxu0 %v1584
      %1647 = vmatprep.subr.bf16.mxu0 0
      %1648 = vmatpush1.bf16.msra.mxu0 %v1585
      %1649 = vmatprep.subr.bf16.mxu0 0
      %1650 = vmatpush1.bf16.msra.mxu0 %v1586
      %1651 = vmatprep.mubr.bf16.mxu0 %v1452
      %1652 = vmatmul.mubr.bf16.gmra.mrb[0].mxu0 %v1451
      %v1653 = vpop.f32.mrb[0].mxu0
      %v1654 = vadd.f32 0.0, %v1653
      %v1655 = vpop.f32.mrb[0].mxu0
      %v1656 = vpop.f32.mrb[0].mxu0
      %v1657 = vadd.f32 0.0, %v1656
      %v1658 = vpop.f32.mrb[0].mxu0
      %1659 = vmatprep.mubr.bf16.mxu0 %v1455
      %1660 = vmatmul.mubr.bf16.gmra.mrb[0].mxu0 %v1454
      %v1661 = vpop.f32.mrb[0].mxu0
      %v1662 = vadd.f32 0.0, %v1661
      %v1663 = vpop.f32.mrb[0].mxu0
      %v1664 = vpop.f32.mrb[0].mxu0
      %v1665 = vadd.f32 0.0, %v1664
      %v1666 = vpop.f32.mrb[0].mxu0
      %1667 = vmatprep.mubr.bf16.mxu0 %v1458
      %1668 = vmatmul.mubr.bf16.gmra.mrb[0].mxu0 %v1457
      %v1669 = vpop.f32.mrb[0].mxu0
      %v1670 = vadd.f32 0.0, %v1669
      %v1671 = vpop.f32.mrb[0].mxu0
      %v1672 = vpop.f32.mrb[0].mxu0
      %v1673 = vadd.f32 0.0, %v1672
      %v1674 = vpop.f32.mrb[0].mxu0
      %1675 = vmatprep.mubr.bf16.mxu0 %v1461
      %1676 = vmatmul.mubr.bf16.gmra.mrb[0].mxu0 %v1460
      %v1677 = vpop.f32.mrb[0].mxu0
      %v1678 = vadd.f32 0.0, %v1677
      %v1679 = vpop.f32.mrb[0].mxu0
      %v1680 = vpop.f32.mrb[0].mxu0
      %v1681 = vadd.f32 0.0, %v1680
      %v1682 = vpop.f32.mrb[0].mxu0
      %1683 = vdwg.mxu0
      %1684 = vmatprep.subr.bf16.mxu0 0
      %1685 = vmatpush1.bf16.msra.mxu0 %v1587
      %1686 = vmatprep.subr.bf16.mxu0 0
      %1687 = vmatpush1.bf16.msra.mxu0 %v1588
      %1688 = vmatprep.subr.bf16.mxu0 0
      %1689 = vmatpush1.bf16.msra.mxu0 0
      %1690 = vmatprep.subr.bf16.mxu0 0
      %1691 = vmatpush1.bf16.msra.mxu0 0
      %1692 = vmatprep.subr.bf16.mxu0 0
      %1693 = vmatpush1.bf16.msra.mxu0 0
      %1694 = vmatprep.subr.bf16.mxu0 0
      %1695 = vmatpush1.bf16.msra.mxu0 0
      %1696 = vmatprep.subr.bf16.mxu0 0
      %1697 = vmatpush1.bf16.msra.mxu0 0
      %1698 = vmatprep.subr.bf16.mxu0 0
      %1699 = vmatpush1.bf16.msra.mxu0 0
      %1700 = vmatprep.subr.bf16.mxu0 0
      %1701 = vmatpush1.bf16.msra.mxu0 0
      %1702 = vmatprep.subr.bf16.mxu0 0
      %1703 = vmatpush1.bf16.msra.mxu0 0
      %1704 = vmatprep.subr.bf16.mxu0 0
      %1705 = vmatpush1.bf16.msra.mxu0 0
      %1706 = vmatprep.subr.bf16.mxu0 0
      %1707 = vmatpush1.bf16.msra.mxu0 0
      %1708 = vmatprep.subr.bf16.mxu0 0
      %1709 = vmatpush1.bf16.msra.mxu0 0
      %1710 = vmatprep.subr.bf16.mxu0 0
      %1711 = vmatpush1.bf16.msra.mxu0 0
      %1712 = vmatprep.subr.bf16.mxu0 0
      %1713 = vmatpush1.bf16.msra.mxu0 0
      %1714 = vmatprep.subr.bf16.mxu0 0
      %1715 = vmatpush1.bf16.msra.mxu0 0
      %1716 = vmatprep.mubr.bf16.mxu0 0
      %1717 = vmatmul.mubr.bf16.gmra.mrb[0].mxu0 %v1608
      %v1718 = vpop.f32.mrb[0].mxu0
      %v1719 = vadd.f32 %v1654, %v1718
      %v1720 = vpop.f32.mrb[0].mxu0
      %v1721 = vpop.f32.mrb[0].mxu0
      %v1722 = vadd.f32 %v1657, %v1721
      %v1723 = vpop.f32.mrb[0].mxu0
      %1724 = vmatprep.mubr.bf16.mxu0 0
      %1725 = vmatmul.mubr.bf16.gmra.mrb[0].mxu0 %v1611
      %v1726 = vpop.f32.mrb[0].mxu0
      %v1727 = vadd.f32 %v1662, %v1726
      %v1728 = vpop.f32.mrb[0].mxu0
      %v1729 = vpop.f32.mrb[0].mxu0
      %v1730 = vadd.f32 %v1665, %v1729
      %v1731 = vpop.f32.mrb[0].mxu0
      %1732 = vmatprep.mubr.bf16.mxu0 0
      %1733 = vmatmul.mubr.bf16.gmra.mrb[0].mxu0 %v1614
      %v1734 = vpop.f32.mrb[0].mxu0
      %v1735 = vadd.f32 %v1670, %v1734
      %v1736 = vpop.f32.mrb[0].mxu0
      %v1737 = vpop.f32.mrb[0].mxu0
      %v1738 = vadd.f32 %v1673, %v1737
      %v1739 = vpop.f32.mrb[0].mxu0
      %1740 = vmatprep.mubr.bf16.mxu0 0
      %1741 = vmatmul.mubr.bf16.gmra.mrb[0].mxu0 %v1617
      %v1742 = vpop.f32.mrb[0].mxu0
      %v1743 = vadd.f32 %v1678, %v1742
      %v1744 = vpop.f32.mrb[0].mxu0
      %v1745 = vpop.f32.mrb[0].mxu0
      %v1746 = vadd.f32 %v1681, %v1745
      %v1747 = vpop.f32.mrb[0].mxu0
      %1748 = vdwg.mxu0
      %v1749 = vsel %vm1054, %v1719, 0.0
      %v1750 = vsel %vm1054, %v1722, 0.0
      %v1751 = vadd.f32 %v1749, %v1750
      %v1752 = vsel %vm1054, %v1727, 0.0
      %v1753 = vadd.f32 %v1751, %v1752
      %v1754 = vsel %vm1054, %v1730, 0.0
      %v1755 = vadd.f32 %v1753, %v1754
      %v1756 = vsel %vm1054, %v1735, 0.0
      %v1757 = vadd.f32 %v1755, %v1756
      %v1758 = vsel %vm1054, %v1738, 0.0
      %v1759 = vadd.f32 %v1757, %v1758
      %v1760 = vsel %vm1054, %v1743, 0.0
      %v1761 = vadd.f32 %v1759, %v1760
      %v1762 = vsel %vm1054, %v1746, 0.0
      %v1763 = vadd.f32 %v1761, %v1762
      %v1764 = vrot.slane %v1763, 4
      %v1765 = vadd.f32 %v1763, %v1764
      %v1766 = vrot.slane %v1765, 2
      %v1767 = vadd.f32 %v1765, %v1766
      %v1768 = vrot.slane %v1767, 1
      %v1769 = vadd.f32 %v1767, %v1768
      %v1770 = vrcp.pop 64.0
      %v1771 = vmul.f32 %v1769, %v1770
      %v1772 = vld [vmem:[%s7] sm:$0xff]
      %v1773 = vld [vmem:[%s7 + $0x8] sm:$0xff]
      %v1774 = vld [vmem:[%s7 + $0x10] sm:$0xff]
      %v1775 = vld [vmem:[%s7 + $0x18] sm:$0xff]
      %v1776 = vld [vmem:[%s8] sm:$0x1]
      %v1778 = vsel %vm1054, %v1771, 0
      %1780 = vmatprep.subr.mxu0 0.0
      %1781 = vmatpush1.msra.mxu0 %v1772
      %1782 = vmatprep.subr.mxu0 0.0
      %1783 = vmatpush1.msra.mxu0 %v1773
      %1784 = vmatprep.subr.mxu0 0.0
      %1785 = vmatpush1.msra.mxu0 %v1774
      %1786 = vmatprep.subr.mxu0 0.0
      %1787 = vmatpush1.msra.mxu0 %v1775
      %1788 = vmatprep.subr.mxu0 0.0
      %1789 = vmatpush1.msra.mxu0 0.0
      %1790 = vmatprep.subr.mxu0 0.0
      %1791 = vmatpush1.msra.mxu0 0.0
      %1792 = vmatprep.subr.mxu0 0.0
      %1793 = vmatpush1.msra.mxu0 0.0
      %1794 = vmatprep.subr.mxu0 0.0
      %1795 = vmatpush1.msra.mxu0 0.0
      %1796 = vmatprep.subr.mxu0 0.0
      %1797 = vmatpush1.msra.mxu0 0.0
      %1798 = vmatprep.subr.mxu0 0.0
      %1799 = vmatpush1.msra.mxu0 0.0
      %1800 = vmatprep.subr.mxu0 0.0
      %1801 = vmatpush1.msra.mxu0 0.0
      %1802 = vmatprep.subr.mxu0 0.0
      %1803 = vmatpush1.msra.mxu0 0.0
      %1804 = vmatprep.subr.mxu0 0.0
      %1805 = vmatpush1.msra.mxu0 0.0
      %1806 = vmatprep.subr.mxu0 0.0
      %1807 = vmatpush1.msra.mxu0 0.0
      %1808 = vmatprep.subr.mxu0 0.0
      %1809 = vmatpush1.msra.mxu0 0.0
      %1810 = vmatprep.subr.mxu0 0.0
      %1811 = vmatpush1.msra.mxu0 0.0
      %1812 = vmatprep.subr.mxu0 0.0
      %1813 = vmatpush1.msra.mxu0 0.0
      %1814 = vmatprep.subr.mxu0 0.0
      %1815 = vmatpush1.msra.mxu0 0.0
      %1816 = vmatprep.subr.mxu0 0.0
      %1817 = vmatpush1.msra.mxu0 0.0
      %1818 = vmatprep.subr.mxu0 0.0
      %1819 = vmatpush1.msra.mxu0 0.0
      %1820 = vmatprep.subr.mxu0 0.0
      %1821 = vmatpush1.msra.mxu0 0.0
      %1822 = vmatprep.subr.mxu0 0.0
      %1823 = vmatpush1.msra.mxu0 0.0
      %1824 = vmatprep.subr.mxu0 0.0
      %1825 = vmatpush1.msra.mxu0 0.0
      %1826 = vmatprep.subr.mxu0 0.0
      %1827 = vmatpush1.msra.mxu0 0.0
      %1828 = vmatprep.subr.mxu0 0.0
      %1829 = vmatpush1.msra.mxu0 0.0
      %1830 = vmatprep.subr.mxu0 0.0
      %1831 = vmatpush1.msra.mxu0 0.0
      %1832 = vmatprep.subr.mxu0 0.0
      %1833 = vmatpush1.msra.mxu0 0.0
      %1834 = vmatprep.subr.mxu0 0.0
      %1835 = vmatpush1.msra.mxu0 0.0
      %1836 = vmatprep.subr.mxu0 0.0
      %1837 = vmatpush1.msra.mxu0 0.0
      %1838 = vmatprep.subr.mxu0 0.0
      %1839 = vmatpush1.msra.mxu0 0.0
      %1840 = vmatprep.subr.mxu0 0.0
      %1841 = vmatpush1.msra.mxu0 0.0
      %1842 = vmatprep.subr.mxu0 0.0
      %1843 = vmatpush1.msra.mxu0 0.0
      %1844 = vmatprep.mubr.f32.mxu0 0.0
      %1845 = vmatmul.mubr.f32.gmra.mrb[0].mxu0 %v1778
      %v1846 = vpop.f32.mrb[0].mxu0
      %v1847 = vadd.f32 %v1776, %v1846
      %v1848 = vpop.f32.mrb[0].mxu0
      %1849 = vdwg.mxu0
      %v1850 = vmax.f32 %v1847, 0.0
      %v1851 = vld [vmem:[%s9] sm:$0x3]
      %v1852 = vld [vmem:[%s10] sm:$0x1]
      %vm1853 = vcmask 15360
      %v1855 = vsel %vm1853, %v1850, 0
      %vm1857 = vcmask 1041408
      %v1859 = vsel %vm1857, %v1851, 0
      %1861 = vmatprep.subr.mxu0 0.0
      %1862 = vmatpush1.msra.mxu0 %v1859
      %1863 = vmatprep.subr.mxu0 0.0
      %1864 = vmatpush1.msra.mxu0 0.0
      %1865 = vmatprep.subr.mxu0 0.0
      %1866 = vmatpush1.msra.mxu0 0.0
      %1867 = vmatprep.subr.mxu0 0.0
      %1868 = vmatpush1.msra.mxu0 0.0
      %1869 = vmatprep.subr.mxu0 0.0
      %1870 = vmatpush1.msra.mxu0 0.0
      %1871 = vmatprep.subr.mxu0 0.0
      %1872 = vmatpush1.msra.mxu0 0.0
      %1873 = vmatprep.subr.mxu0 0.0
      %1874 = vmatpush1.msra.mxu0 0.0
      %1875 = vmatprep.subr.mxu0 0.0
      %1876 = vmatpush1.msra.mxu0 0.0
      %1877 = vmatprep.subr.mxu0 0.0
      %1878 = vmatpush1.msra.mxu0 0.0
      %1879 = vmatprep.subr.mxu0 0.0
      %1880 = vmatpush1.msra.mxu0 0.0
      %1881 = vmatprep.subr.mxu0 0.0
      %1882 = vmatpush1.msra.mxu0 0.0
      %1883 = vmatprep.subr.mxu0 0.0
      %1884 = vmatpush1.msra.mxu0 0.0
      %1885 = vmatprep.subr.mxu0 0.0
      %1886 = vmatpush1.msra.mxu0 0.0
      %1887 = vmatprep.subr.mxu0 0.0
      %1888 = vmatpush1.msra.mxu0 0.0
      %1889 = vmatprep.subr.mxu0 0.0
      %1890 = vmatpush1.msra.mxu0 0.0
      %1891 = vmatprep.subr.mxu0 0.0
      %1892 = vmatpush1.msra.mxu0 0.0
      %1893 = vmatprep.subr.mxu0 0.0
      %1894 = vmatpush1.msra.mxu0 0.0
      %1895 = vmatprep.subr.mxu0 0.0
      %1896 = vmatpush1.msra.mxu0 0.0
      %1897 = vmatprep.subr.mxu0 0.0
      %1898 = vmatpush1.msra.mxu0 0.0
      %1899 = vmatprep.subr.mxu0 0.0
      %1900 = vmatpush1.msra.mxu0 0.0
      %1901 = vmatprep.subr.mxu0 0.0
      %1902 = vmatpush1.msra.mxu0 0.0
      %1903 = vmatprep.subr.mxu0 0.0
      %1904 = vmatpush1.msra.mxu0 0.0
      %1905 = vmatprep.subr.mxu0 0.0
      %1906 = vmatpush1.msra.mxu0 0.0
      %1907 = vmatprep.subr.mxu0 0.0
      %1908 = vmatpush1.msra.mxu0 0.0
      %1909 = vmatprep.subr.mxu0 0.0
      %1910 = vmatpush1.msra.mxu0 0.0
      %1911 = vmatprep.subr.mxu0 0.0
      %1912 = vmatpush1.msra.mxu0 0.0
      %1913 = vmatprep.subr.mxu0 0.0
      %1914 = vmatpush1.msra.mxu0 0.0
      %1915 = vmatprep.subr.mxu0 0.0
      %1916 = vmatpush1.msra.mxu0 0.0
      %1917 = vmatprep.subr.mxu0 0.0
      %1918 = vmatpush1.msra.mxu0 0.0
      %1919 = vmatprep.subr.mxu0 0.0
      %1920 = vmatpush1.msra.mxu0 0.0
      %1921 = vmatprep.subr.mxu0 0.0
      %1922 = vmatpush1.msra.mxu0 0.0
      %1923 = vmatprep.subr.mxu0 0.0
      %1924 = vmatpush1.msra.mxu0 0.0
      %1925 = vmatprep.mubr.f32.mxu0 0.0
      %1926 = vmatmul.mubr.f32.gmra.mrb[0].mxu0 %v1855
      %v1927 = vpop.f32.mrb[0].mxu0
      %v1928 = vadd.f32 %v1852, %v1927
      %v1929 = vpop.f32.mrb[0].mxu0
      %1930 = vdwg.mxu0
      %v1931 = vxor.u32 %v1928, 2147483648
      %v1932 = vmul.f32 %v1931, 1.442695
      %v1933 = vpow.pop %v1932
      %v1934 = vadd.f32 %v1933, 1.0
      %v1935 = vrcp.pop %v1934
      %v1936 = vmul.f32 1.0, %v1935
      %v1937 = vlaneseq
      %v1938 = vshrl.u32 %v1937, 7
      %v1939 = vsub.s32 0, %v1938
      %v1940 = vrot.slane %v1936, %v1939
      %v1941 = vmul.f32 %v1719, %v1940
      %v1942 = vmul.f32 %v1722, %v1940
      %v1943 = vmul.f32 %v1727, %v1940
      %v1944 = vmul.f32 %v1730, %v1940
      %v1945 = vmul.f32 %v1735, %v1940
      %v1946 = vmul.f32 %v1738, %v1940
      %v1947 = vmul.f32 %v1743, %v1940
      %v1948 = vmul.f32 %v1746, %v1940
      %1957 = vrot.lane.b32.xlu0 %v986, 96
      %v1958 = vpop.permute.xlu0 %1957
      %1959 = vrot.lane.b32.xlu0 %v989, 96
      %v1960 = vpop.permute.xlu0 %1959
      %1961 = vrot.lane.b32.xlu0 %v994, 96
      %v1962 = vpop.permute.xlu0 %1961
      %1963 = vrot.lane.b32.xlu0 %v997, 96
      %v1964 = vpop.permute.xlu0 %1963
      %1965 = vrot.lane.b32.xlu0 %v1002, 96
      %v1966 = vpop.permute.xlu0 %1965
      %1967 = vrot.lane.b32.xlu0 %v1005, 96
      %v1968 = vpop.permute.xlu0 %1967
      %1969 = vrot.lane.b32.xlu0 %v1010, 96
      %v1970 = vpop.permute.xlu0 %1969
      %1971 = vrot.lane.b32.xlu0 %v1013, 96
      %v1972 = vpop.permute.xlu0 %1971
      %v1981 = vadd.f32 %v1941, %v1958
      %v1982 = vadd.f32 %v1942, %v1960
      %v1983 = vadd.f32 %v1943, %v1962
      %v1984 = vadd.f32 %v1944, %v1964
      %v1985 = vadd.f32 %v1945, %v1966
      %v1986 = vadd.f32 %v1946, %v1968
      %v1987 = vadd.f32 %v1947, %v1970
      %v1988 = vadd.f32 %v1948, %v1972
      %1989 = vst.msk [vmem:[%s386] sm:$0xff] %vm1054, %v1981
      %1990 = vst.msk [vmem:[%s386 + $0x8] sm:$0xff] %vm1054, %v1982
      %1991 = vst.msk [vmem:[%s386 + $0x10] sm:$0xff] %vm1054, %v1983
      %1992 = vst.msk [vmem:[%s386 + $0x18] sm:$0xff] %vm1054, %v1984
      %1993 = vst.msk [vmem:[%s386 + $0x20] sm:$0xff] %vm1054, %v1985
      %1994 = vst.msk [vmem:[%s386 + $0x28] sm:$0xff] %vm1054, %v1986
      %1995 = vst.msk [vmem:[%s386 + $0x30] sm:$0xff] %vm1054, %v1987
      %1996 = vst.msk [vmem:[%s386 + $0x38] sm:$0xff] %vm1054, %v1988
      %p1997 = scmp.lt.s32.totalorder %s22, 1
      %s1998 = scalar_select %p1997, %s22, 1
      %s1999 = smul.addr %s1998, 8
      %s2000 = smul.addr %s1999, 8
      %s2001 = scalar_lea.vmem %s11, %s2000
      // Predicated region
      $region65: #{tpu_custom_call.1} parent=63 // pred_check
        %p2002 = pneg %p276
      $region66: #{tpu_custom_call.1} parent=63 // pred_check_branch
        %2004 = sbr.rel (%p2002) target = $region68
      $region67: #{tpu_custom_call.1} parent=63 // pred_region
        _
      $region68: #{tpu_custom_call.1} parent=63 // pred_fallthru
        _
    $region64: #{tpu_custom_call.1} parent=5 // pred_fallthru
      _
    %p2005 = scmp.le.s32.totalorder 2, %s17
    // Predicated region
    $region69: #{tpu_custom_call.1} parent=5 // pred_check
      %p2006 = pneg %p2005
    $region70: #{tpu_custom_call.1} parent=5 // pred_check_branch
      %2008 = sbr.rel (%p2006) target = $region72
    $region71: #{tpu_custom_call.1} parent=5 // pred_region
      %s2009 = ssub.s32 %s17, 2
      // Predicated region
      $region73: #{tpu_custom_call.1} parent=71 // pred_check
        %p2010 = pneg %p282
      $region74: #{tpu_custom_call.1} parent=71 // pred_check_branch
        %2012 = sbr.rel (%p2010) target = $region76
      $region75: #{tpu_custom_call.1} parent=71 // pred_region
        %p2013 = scmp.lt.s32.totalorder %s23, 1
        %s2014 = scalar_select %p2013, %s23, 1
        %s2015 = smul.addr %s2014, 8
        %s2016 = smul.addr %s2015, 8
        %s2017 = scalar_lea.vmem %s11, %s2016
      $region76: #{tpu_custom_call.1} parent=71 // pred_fallthru
        _
    $region72: #{tpu_custom_call.1} parent=5 // pred_fallthru
      _
  $region6: #{tpu_custom_call.1} parent=0 // loop_footer
    %s21 = sadd.s32 1, %s17
  $region7: #{tpu_custom_call.1} parent=0 // loop_footer_branch
    %16 = sbr.rel target = $region3
  $region8: #{tpu_custom_call.1} parent=0 // loop_exit
    _

</llo_original>
